<compile_context>
chip_gen: v5e
topology: v5e:2x2
jax: 0.10.0
libtpu: 0.0.40
codegen_flags: <defaults>
</compile_context>

<pallas_src>
import functools
from typing import NamedTuple

import jax
import jax.numpy as jnp
from jax import lax
from jax.experimental import pallas as pl
from jax.experimental.pallas import tpu as pltpu

LANE = 128  # TPU lane width


def _round_up(x, m):
    return ((x + m - 1) // m) * m


def _sublane_min(dtype):
    return {4: 8, 2: 16, 1: 32}.get(jnp.dtype(dtype).itemsize, 8)


def _vmem_capacity_bytes():
    """Per-core VMEM capacity; conservative (v7x) fallback if the query fails."""
    try:
        return int(pltpu.get_tpu_info().vmem_capacity_bytes)
    except Exception:
        return 64 << 20


class PackedFFN(NamedTuple):
    ws: tuple    # per-layer weights, transposed to [in, out], lane-padded, compute dtype
    bs: tuple    # per-layer biases, shape (1, out_padded), float32
    dims: tuple  # real layer widths (n_in, h0, ..., n_out) as Python ints


def pack_ffn_params(weights, biases, compute_dtype=jnp.bfloat16):
    """Pre-pack PyTorch-layout params once: weights[l] is [out, in], biases[l] is [out]."""
    n_layers = len(weights)
    assert len(biases) == n_layers
    dims = (int(weights[0].shape[1]),) + tuple(int(w.shape[0]) for w in weights)
    dims_p = tuple(_round_up(d, LANE) for d in dims)
    ws, bs = [], []
    for l in range(n_layers):
        di, do = dims[l], dims[l + 1]
        dip, dop = dims_p[l], dims_p[l + 1]
        w_t = jnp.pad(jnp.asarray(weights[l]).T,
                      ((0, dip - di), (0, dop - do))).astype(compute_dtype)
        b_p = jnp.pad(jnp.asarray(biases[l]).astype(jnp.float32),
                      (0, dop - do))[None, :]
        ws.append(w_t)
        bs.append(b_p)
    return PackedFFN(tuple(ws), tuple(bs), dims)


def _make_ffn_kernel(n_layers, act, precision):
    """Fused n_layers-deep MLP over one batch tile; weights resident in VMEM."""

    def kernel(x_ref, *refs):
        o_ref = refs[-1]
        wb = refs[:-1]                      # w0, b0, w1, b1, ...
        h = x_ref[...]                      # original x dtype; cast on the VPU below
        for l in range(n_layers):
            w = wb[2 * l][...]              # (d_l, d_{l+1}) compute dtype
            b = wb[2 * l + 1][...]          # (1, d_{l+1}) float32
            acc = jnp.dot(h.astype(w.dtype), w,
                          preferred_element_type=jnp.float32,
                          precision=precision) + b
            if l < n_layers - 1:
                acc = act(acc)              # epilogue in f32 on the MXU accumulator
            h = acc
        o_ref[...] = h.astype(o_ref.dtype)

    return kernel


@functools.partial(
    jax.jit,
    static_argnames=("dims", "act", "out_dtype", "tile_b", "single_buffer_weights"))
def _ffn_forward(x, ws, bs, *, dims, act, out_dtype, tile_b, single_buffer_weights):
    B, n_in = x.shape
    n_layers = len(ws)
    assert n_in == dims[0], f"x feature dim {n_in} != packed n_in {dims[0]}"

    compute_dtype = jnp.dtype(ws[0].dtype)
    out_dtype = jnp.dtype(x.dtype) if out_dtype is None else jnp.dtype(out_dtype)
    precision = lax.Precision.HIGHEST if compute_dtype == jnp.float32 else None

    dims_p = (ws[0].shape[0],) + tuple(int(w.shape[1]) for w in ws)
    x_item = jnp.dtype(x.dtype).itemsize
    out_item = out_dtype.itemsize
    sub_min = max(_sublane_min(x.dtype), _sublane_min(out_dtype))

    # ---- generation-aware VMEM budget ----------------------------------------
    vmem_cap = _vmem_capacity_bytes()          # 128 MiB on v5e/v6e, 64 MiB on v7x
    budget = int(0.85 * vmem_cap)              # headroom for Mosaic internal scratch

    buf_factor = 1 if single_buffer_weights else 2
    w_bytes = sum(dims_p[l] * dims_p[l + 1] for l in range(n_layers)) * compute_dtype.itemsize
    b_bytes = sum(dims_p[1:]) * 4
    resident = buf_factor * (w_bytes + b_bytes)

    # per-row streaming cost: double-buffered x/out tiles + f32 intermediates
    per_row = 2 * (dims_p[0] * x_item + dims_p[-1] * out_item) + 3 * max(dims_p) * 4

    if resident + sub_min * per_row > budget:
        # TODO(synk): weight-streaming fallback (tile widest layer over K/N with an
        # f32 accumulator + pl.when init/finalize) for hidden dims that don't fit.
        raise ValueError(
            f"FFN weights ({resident >> 20} MiB resident) exceed the VMEM budget "
            f"({budget >> 20} MiB); weight-streaming fallback not implemented.")

    # ---- batch tile: largest that fits, >= sub_min, <= 1024, <= padded batch --
    b_cap = _round_up(B, sub_min)
    if tile_b is not None:
        tile = max(sub_min, _round_up(min(int(tile_b), b_cap), sub_min))
    else:
        tile = (budget - resident) // per_row
        tile = int(min(tile, 1024, b_cap))
        tile = max(sub_min, (tile // sub_min) * sub_min)
    # keep >= 2 grid steps when possible so both v7x TensorCores get work
    while (_round_up(B, tile) // tile) < 2 and tile >= 2 * sub_min:
        tile = max(sub_min, _round_up(tile // 2, sub_min))
    B_pad = _round_up(B, tile)
    grid = (B_pad // tile,)

    # ---- operands: pad only if actually needed, keep x in its original dtype --
    x_p = x
    if B_pad != B or dims_p[0] != dims[0]:
        x_p = jnp.pad(x, ((0, B_pad - B), (0, dims_p[0] - dims[0])))

    flat_ops = [x_p]
    in_specs = [pl.BlockSpec((tile, dims_p[0]), lambda i: (i, 0))]
    wspec_kw = {"pipeline_mode": pl.Buffered(1)} if single_buffer_weights else {}
    for l in range(n_layers):
        flat_ops += [ws[l], bs[l]]
        # grid-invariant blocks: DMA'd once, reused for every batch tile
        in_specs.append(
            pl.BlockSpec((dims_p[l], dims_p[l + 1]), lambda i: (0, 0), **wspec_kw))
        in_specs.append(
            pl.BlockSpec((1, dims_p[l + 1]), lambda i: (0, 0), **wspec_kw))
    out_spec = pl.BlockSpec((tile, dims_p[-1]), lambda i: (i, 0))

    io_bytes = 2 * tile * (dims_p[0] * x_item + dims_p[-1] * out_item)
    act_bytes = 3 * tile * max(dims_p) * 4
    needed = resident + io_bytes + act_bytes
    vmem_limit = int(min(max(int(needed * 1.25), 32 << 20), budget))

    out = pl.pallas_call(
        _make_ffn_kernel(n_layers, act, precision),
        out_shape=jax.ShapeDtypeStruct((B_pad, dims_p[-1]), out_dtype),
        grid=grid,
        in_specs=in_specs,
        out_specs=out_spec,
        compiler_params=pltpu.CompilerParams(
            dimension_semantics=("parallel",),
            vmem_limit_bytes=vmem_limit,
        ),
    )(*flat_ops)

    if B_pad != B or dims_p[-1] != dims[-1]:
        out = out[:B, :dims[-1]]
    return out


# If pipeline_mode=pl.Buffered(1) is rejected by the installed JAX/Mosaic build,
# fall back (once) to default double-buffering so the kernel still runs.
_SINGLE_BUFFER_OK = True


def ffn_forward(x, params: PackedFFN, *, act=jax.nn.relu, out_dtype=None, tile_b=None):
    """Fused FFN forward.  `params` comes from pack_ffn_params (do it once)."""
    global _SINGLE_BUFFER_OK
    if _SINGLE_BUFFER_OK:
        try:
            return _ffn_forward(x, params.ws, params.bs, dims=params.dims, act=act,
                                out_dtype=out_dtype, tile_b=tile_b,
                                single_buffer_weights=True)
        except Exception:
            _SINGLE_BUFFER_OK = False
    return _ffn_forward(x, params.ws, params.bs, dims=params.dims, act=act,
                        out_dtype=out_dtype, tile_b=tile_b,
                        single_buffer_weights=False)


def init_linear(key, in_f, out_f, dtype=jnp.float32):
    """PyTorch-style init: U(-1/sqrt(in), 1/sqrt(in)). Returns W:[out,in], b:[out]."""
    kw, kb = jax.random.split(key)
    bound = 1.0 / (in_f ** 0.5)
    w = jax.random.uniform(kw, (out_f, in_f), dtype, -bound, bound)
    b = jax.random.uniform(kb, (out_f,), dtype, -bound, bound)
    return w, b


if __name__ == "__main__":
    # Shapes consistent with the module: FFN(n_in=8, hidden_dims=(32, 32),
    # out_mult=2, act=ReLU), batch=16.
    n_in = 8
    hidden_dims = (32, 32)
    out_mult = 2
    batch = 16
    n_out = n_in * out_mult

    key = jax.random.PRNGKey(0)
    keys = jax.random.split(key, 4)
    x = jax.random.normal(keys[0], (batch, n_in), jnp.float32)

    layer_dims = [n_in] + list(hidden_dims) + [n_out]
    weights, biases = [], []
    for l in range(len(layer_dims) - 1):
        w, b = init_linear(keys[1 + l], layer_dims[l], layer_dims[l + 1])
        weights.append(w)
        biases.append(b)

    # Pure-JAX reference with the same semantics as the PyTorch forward.
    def ref(xv):
        h = xv
        for l in range(len(weights) - 1):
            h = jax.nn.relu(h @ weights[l].T + biases[l])
        return h @ weights[-1].T + biases[-1]

    expected = ref(x)

    # Strict-accuracy path: f32 operands, MXU precision HIGHEST.
    packed_f32 = pack_ffn_params(weights, biases, compute_dtype=jnp.float32)
    out_f32 = jax.block_until_ready(ffn_forward(x, packed_f32))
    assert out_f32.shape == (batch, n_out)
    assert jnp.allclose(out_f32, expected, atol=1e-5, rtol=1e-5)

    # Default optimized path: bf16 operands, f32 accumulation (documented trade-off).
    packed_bf16 = pack_ffn_params(weights, biases, compute_dtype=jnp.bfloat16)
    out_bf16 = jax.block_until_ready(ffn_forward(x, packed_bf16))
    assert out_bf16.shape == (batch, n_out)
    assert jnp.allclose(out_bf16, expected, atol=7e-2, rtol=7e-2)

    print("KERNEL_OK")
</pallas_src>

<mosaic_0001>
module attributes {stable_mosaic.version = 11 : i64} {
  func.func @kernel(%arg0: i32, %arg1: memref<8x128xf32, #tpu.memory_space<vmem>>, %arg2: memref<128x128xf32, #tpu.memory_space<vmem>>, %arg3: memref<1x128xf32, #tpu.memory_space<vmem>>, %arg4: memref<128x128xf32, #tpu.memory_space<vmem>>, %arg5: memref<1x128xf32, #tpu.memory_space<vmem>>, %arg6: memref<128x128xf32, #tpu.memory_space<vmem>>, %arg7: memref<1x128xf32, #tpu.memory_space<vmem>>, %arg8: memref<8x128xf32, #tpu.memory_space<vmem>>) attributes {dimension_semantics = [#tpu.dimension_semantics<parallel>], iteration_bounds = array<i64: 2>, scalar_prefetch = 0 : i64, scratch_operands = 0 : i64, tpu.core_type = #tpu.core_type<tc>, window_params = [{transform_indices = @transform_0, window_bounds = array<i64: 8, 128>}, {pipeline_mode = #tpu.pipeline_mode<synchronous>, transform_indices = @transform_1, window_bounds = array<i64: 128, 128>}, {pipeline_mode = #tpu.pipeline_mode<synchronous>, transform_indices = @transform_2, window_bounds = array<i64: 1, 128>}, {pipeline_mode = #tpu.pipeline_mode<synchronous>, transform_indices = @transform_3, window_bounds = array<i64: 128, 128>}, {pipeline_mode = #tpu.pipeline_mode<synchronous>, transform_indices = @transform_4, window_bounds = array<i64: 1, 128>}, {pipeline_mode = #tpu.pipeline_mode<synchronous>, transform_indices = @transform_5, window_bounds = array<i64: 128, 128>}, {pipeline_mode = #tpu.pipeline_mode<synchronous>, transform_indices = @transform_6, window_bounds = array<i64: 1, 128>}, {transform_indices = @transform_7, window_bounds = array<i64: 8, 128>}]} {
    %c0 = arith.constant 0 : index
    %c0_0 = arith.constant 0 : index
    %0 = vector.load %arg1[%c0, %c0_0] : memref<8x128xf32, #tpu.memory_space<vmem>>, vector<8x128xf32>
    %c0_1 = arith.constant 0 : index
    %c0_2 = arith.constant 0 : index
    %1 = vector.load %arg2[%c0_1, %c0_2] : memref<128x128xf32, #tpu.memory_space<vmem>>, vector<128x128xf32>
    %c0_3 = arith.constant 0 : index
    %c0_4 = arith.constant 0 : index
    %2 = vector.load %arg3[%c0_3, %c0_4] : memref<1x128xf32, #tpu.memory_space<vmem>>, vector<1x128xf32>
    %cst = arith.constant dense<0.000000e+00> : vector<8x128xf32>
    %3 = tpu.matmul %0, %1, %cst {dimension_numbers = #tpu.dot_dimension_numbers<[1], [0], [0], [1], [0, 0, 1, 1], [], []>, precision = #tpu.contract_precision<fp32>} : vector<8x128xf32>, vector<128x128xf32>, vector<8x128xf32> -> vector<8x128xf32>
    %4 = vector.broadcast %2 : vector<1x128xf32> to vector<8x128xf32>
    %5 = arith.addf %3, %4 : vector<8x128xf32>
    %cst_5 = arith.constant 0.000000e+00 : f32
    %6 = vector.broadcast %cst_5 : f32 to vector<8x128xf32>
    %7 = arith.maximumf %5, %6 : vector<8x128xf32>
    %c0_6 = arith.constant 0 : index
    %c0_7 = arith.constant 0 : index
    %8 = vector.load %arg4[%c0_6, %c0_7] : memref<128x128xf32, #tpu.memory_space<vmem>>, vector<128x128xf32>
    %c0_8 = arith.constant 0 : index
    %c0_9 = arith.constant 0 : index
    %9 = vector.load %arg5[%c0_8, %c0_9] : memref<1x128xf32, #tpu.memory_space<vmem>>, vector<1x128xf32>
    %cst_10 = arith.constant dense<0.000000e+00> : vector<8x128xf32>
    %10 = tpu.matmul %7, %8, %cst_10 {dimension_numbers = #tpu.dot_dimension_numbers<[1], [0], [0], [1], [0, 0, 1, 1], [], []>, precision = #tpu.contract_precision<fp32>} : vector<8x128xf32>, vector<128x128xf32>, vector<8x128xf32> -> vector<8x128xf32>
    %11 = vector.broadcast %9 : vector<1x128xf32> to vector<8x128xf32>
    %12 = arith.addf %10, %11 : vector<8x128xf32>
    %cst_11 = arith.constant 0.000000e+00 : f32
    %13 = vector.broadcast %cst_11 : f32 to vector<8x128xf32>
    %14 = arith.maximumf %12, %13 : vector<8x128xf32>
    %c0_12 = arith.constant 0 : index
    %c0_13 = arith.constant 0 : index
    %15 = vector.load %arg6[%c0_12, %c0_13] : memref<128x128xf32, #tpu.memory_space<vmem>>, vector<128x128xf32>
    %c0_14 = arith.constant 0 : index
    %c0_15 = arith.constant 0 : index
    %16 = vector.load %arg7[%c0_14, %c0_15] : memref<1x128xf32, #tpu.memory_space<vmem>>, vector<1x128xf32>
    %cst_16 = arith.constant dense<0.000000e+00> : vector<8x128xf32>
    %17 = tpu.matmul %14, %15, %cst_16 {dimension_numbers = #tpu.dot_dimension_numbers<[1], [0], [0], [1], [0, 0, 1, 1], [], []>, precision = #tpu.contract_precision<fp32>} : vector<8x128xf32>, vector<128x128xf32>, vector<8x128xf32> -> vector<8x128xf32>
    %18 = vector.broadcast %16 : vector<1x128xf32> to vector<8x128xf32>
    %19 = arith.addf %17, %18 : vector<8x128xf32>
    %c0_17 = arith.constant 0 : index
    %c0_18 = arith.constant 0 : index
    %20 = vector.load %arg8[%c0_17, %c0_18] : memref<8x128xf32, #tpu.memory_space<vmem>>, vector<8x128xf32>
    tpu.vector_store %arg8[%c0_17, %c0_18], %19 {strides = array<i32>} : memref<8x128xf32, #tpu.memory_space<vmem>>, vector<8x128xf32>,
    return
  }
  func.func @transform_0(%arg0: i32) -> (i32, i32) {
    %c0_i32 = arith.constant 0 : i32
    %c0_i32_0 = arith.constant 0 : i32
    return %arg0, %c0_i32 : i32, i32
  }
  func.func @transform_1(%arg0: i32) -> (i32, i32) {
    %c0_i32 = arith.constant 0 : i32
    %c0_i32_0 = arith.constant 0 : i32
    %c0_i32_1 = arith.constant 0 : i32
    return %c0_i32, %c0_i32_0 : i32, i32
  }
  func.func @transform_2(%arg0: i32) -> (i32, i32) {
    %c0_i32 = arith.constant 0 : i32
    %c0_i32_0 = arith.constant 0 : i32
    %c0_i32_1 = arith.constant 0 : i32
    return %c0_i32, %c0_i32_0 : i32, i32
  }
  func.func @transform_3(%arg0: i32) -> (i32, i32) {
    %c0_i32 = arith.constant 0 : i32
    %c0_i32_0 = arith.constant 0 : i32
    %c0_i32_1 = arith.constant 0 : i32
    return %c0_i32, %c0_i32_0 : i32, i32
  }
  func.func @transform_4(%arg0: i32) -> (i32, i32) {
    %c0_i32 = arith.constant 0 : i32
    %c0_i32_0 = arith.constant 0 : i32
    %c0_i32_1 = arith.constant 0 : i32
    return %c0_i32, %c0_i32_0 : i32, i32
  }
  func.func @transform_5(%arg0: i32) -> (i32, i32) {
    %c0_i32 = arith.constant 0 : i32
    %c0_i32_0 = arith.constant 0 : i32
    %c0_i32_1 = arith.constant 0 : i32
    return %c0_i32, %c0_i32_0 : i32, i32
  }
  func.func @transform_6(%arg0: i32) -> (i32, i32) {
    %c0_i32 = arith.constant 0 : i32
    %c0_i32_0 = arith.constant 0 : i32
    %c0_i32_1 = arith.constant 0 : i32
    return %c0_i32, %c0_i32_0 : i32, i32
  }
  func.func @transform_7(%arg0: i32) -> (i32, i32) {
    %c0_i32 = arith.constant 0 : i32
    %c0_i32_0 = arith.constant 0 : i32
    return %arg0, %c0_i32 : i32, i32
  }
}

module attributes {stable_mosaic.version = 11 : i64} {
  func.func @kernel(%arg0: i32, %arg1: memref<8x128xf32, #tpu.memory_space<vmem>>, %arg2: memref<128x128xf32, #tpu.memory_space<vmem>>, %arg3: memref<1x128xf32, #tpu.memory_space<vmem>>, %arg4: memref<128x128xf32, #tpu.memory_space<vmem>>, %arg5: memref<1x128xf32, #tpu.memory_space<vmem>>, %arg6: memref<128x128xf32, #tpu.memory_space<vmem>>, %arg7: memref<1x128xf32, #tpu.memory_space<vmem>>, %arg8: memref<8x128xf32, #tpu.memory_space<vmem>>) attributes {dimension_semantics = [#tpu.dimension_semantics<parallel>], iteration_bounds = array<i64: 2>, scalar_prefetch = 0 : i64, scratch_operands = 0 : i64, tpu.core_type = #tpu.core_type<tc>, window_params = [{transform_indices = @transform_0, window_bounds = array<i64: 8, 128>}, {pipeline_mode = #tpu.pipeline_mode<synchronous>, transform_indices = @transform_1, window_bounds = array<i64: 128, 128>}, {pipeline_mode = #tpu.pipeline_mode<synchronous>, transform_indices = @transform_2, window_bounds = array<i64: 1, 128>}, {pipeline_mode = #tpu.pipeline_mode<synchronous>, transform_indices = @transform_3, window_bounds = array<i64: 128, 128>}, {pipeline_mode = #tpu.pipeline_mode<synchronous>, transform_indices = @transform_4, window_bounds = array<i64: 1, 128>}, {pipeline_mode = #tpu.pipeline_mode<synchronous>, transform_indices = @transform_5, window_bounds = array<i64: 128, 128>}, {pipeline_mode = #tpu.pipeline_mode<synchronous>, transform_indices = @transform_6, window_bounds = array<i64: 1, 128>}, {transform_indices = @transform_7, window_bounds = array<i64: 8, 128>}]} {
    %c0 = arith.constant 0 : index
    %c0_0 = arith.constant 0 : index
    %0 = vector.load %arg1[%c0, %c0_0] : memref<8x128xf32, #tpu.memory_space<vmem>>, vector<8x128xf32>
    %c0_1 = arith.constant 0 : index
    %c0_2 = arith.constant 0 : index
    %1 = vector.load %arg2[%c0_1, %c0_2] : memref<128x128xf32, #tpu.memory_space<vmem>>, vector<128x128xf32>
    %c0_3 = arith.constant 0 : index
    %c0_4 = arith.constant 0 : index
    %2 = vector.load %arg3[%c0_3, %c0_4] : memref<1x128xf32, #tpu.memory_space<vmem>>, vector<1x128xf32>
    %cst = arith.constant dense<0.000000e+00> : vector<8x128xf32>
    %3 = tpu.matmul %0, %1, %cst {dimension_numbers = #tpu.dot_dimension_numbers<[1], [0], [0], [1], [0, 0, 1, 1], [], []>, precision = #tpu.contract_precision<fp32>} : vector<8x128xf32>, vector<128x128xf32>, vector<8x128xf32> -> vector<8x128xf32>
    %4 = vector.broadcast %2 : vector<1x128xf32> to vector<8x128xf32>
    %5 = arith.addf %3, %4 : vector<8x128xf32>
    %cst_5 = arith.constant 0.000000e+00 : f32
    %6 = vector.broadcast %cst_5 : f32 to vector<8x128xf32>
    %7 = arith.maximumf %5, %6 : vector<8x128xf32>
    %c0_6 = arith.constant 0 : index
    %c0_7 = arith.constant 0 : index
    %8 = vector.load %arg4[%c0_6, %c0_7] : memref<128x128xf32, #tpu.memory_space<vmem>>, vector<128x128xf32>
    %c0_8 = arith.constant 0 : index
    %c0_9 = arith.constant 0 : index
    %9 = vector.load %arg5[%c0_8, %c0_9] : memref<1x128xf32, #tpu.memory_space<vmem>>, vector<1x128xf32>
    %cst_10 = arith.constant dense<0.000000e+00> : vector<8x128xf32>
    %10 = tpu.matmul %7, %8, %cst_10 {dimension_numbers = #tpu.dot_dimension_numbers<[1], [0], [0], [1], [0, 0, 1, 1], [], []>, precision = #tpu.contract_precision<fp32>} : vector<8x128xf32>, vector<128x128xf32>, vector<8x128xf32> -> vector<8x128xf32>
    %11 = vector.broadcast %9 : vector<1x128xf32> to vector<8x128xf32>
    %12 = arith.addf %10, %11 : vector<8x128xf32>
    %cst_11 = arith.constant 0.000000e+00 : f32
    %13 = vector.broadcast %cst_11 : f32 to vector<8x128xf32>
    %14 = arith.maximumf %12, %13 : vector<8x128xf32>
    %c0_12 = arith.constant 0 : index
    %c0_13 = arith.constant 0 : index
    %15 = vector.load %arg6[%c0_12, %c0_13] : memref<128x128xf32, #tpu.memory_space<vmem>>, vector<128x128xf32>
    %c0_14 = arith.constant 0 : index
    %c0_15 = arith.constant 0 : index
    %16 = vector.load %arg7[%c0_14, %c0_15] : memref<1x128xf32, #tpu.memory_space<vmem>>, vector<1x128xf32>
    %cst_16 = arith.constant dense<0.000000e+00> : vector<8x128xf32>
    %17 = tpu.matmul %14, %15, %cst_16 {dimension_numbers = #tpu.dot_dimension_numbers<[1], [0], [0], [1], [0, 0, 1, 1], [], []>, precision = #tpu.contract_precision<fp32>} : vector<8x128xf32>, vector<128x128xf32>, vector<8x128xf32> -> vector<8x128xf32>
    %18 = vector.broadcast %16 : vector<1x128xf32> to vector<8x128xf32>
    %19 = arith.addf %17, %18 : vector<8x128xf32>
    %c0_17 = arith.constant 0 : index
    %c0_18 = arith.constant 0 : index
    %20 = vector.load %arg8[%c0_17, %c0_18] : memref<8x128xf32, #tpu.memory_space<vmem>>, vector<8x128xf32>
    tpu.vector_store %arg8[%c0_17, %c0_18], %19 {strides = array<i32>} : memref<8x128xf32, #tpu.memory_space<vmem>>, vector<8x128xf32>,
    return
  }
  func.func @transform_0(%arg0: i32) -> (i32, i32) {
    %c0_i32 = arith.constant 0 : i32
    %c0_i32_0 = arith.constant 0 : i32
    return %arg0, %c0_i32 : i32, i32
  }
  func.func @transform_1(%arg0: i32) -> (i32, i32) {
    %c0_i32 = arith.constant 0 : i32
    %c0_i32_0 = arith.constant 0 : i32
    %c0_i32_1 = arith.constant 0 : i32
    return %c0_i32, %c0_i32_0 : i32, i32
  }
  func.func @transform_2(%arg0: i32) -> (i32, i32) {
    %c0_i32 = arith.constant 0 : i32
    %c0_i32_0 = arith.constant 0 : i32
    %c0_i32_1 = arith.constant 0 : i32
    return %c0_i32, %c0_i32_0 : i32, i32
  }
  func.func @transform_3(%arg0: i32) -> (i32, i32) {
    %c0_i32 = arith.constant 0 : i32
    %c0_i32_0 = arith.constant 0 : i32
    %c0_i32_1 = arith.constant 0 : i32
    return %c0_i32, %c0_i32_0 : i32, i32
  }
  func.func @transform_4(%arg0: i32) -> (i32, i32) {
    %c0_i32 = arith.constant 0 : i32
    %c0_i32_0 = arith.constant 0 : i32
    %c0_i32_1 = arith.constant 0 : i32
    return %c0_i32, %c0_i32_0 : i32, i32
  }
  func.func @transform_5(%arg0: i32) -> (i32, i32) {
    %c0_i32 = arith.constant 0 : i32
    %c0_i32_0 = arith.constant 0 : i32
    %c0_i32_1 = arith.constant 0 : i32
    return %c0_i32, %c0_i32_0 : i32, i32
  }
  func.func @transform_6(%arg0: i32) -> (i32, i32) {
    %c0_i32 = arith.constant 0 : i32
    %c0_i32_0 = arith.constant 0 : i32
    %c0_i32_1 = arith.constant 0 : i32
    return %c0_i32, %c0_i32_0 : i32, i32
  }
  func.func @transform_7(%arg0: i32) -> (i32, i32) {
    %c0_i32 = arith.constant 0 : i32
    %c0_i32_0 = arith.constant 0 : i32
    return %arg0, %c0_i32 : i32, i32
  }
}

</mosaic_0001>

<llo_original>
// kernel: _ffn_forward.1
$region0: #{_ffn_forward.1}
  #allocation0 [shape = 'u32[]', space=smem, size = 0x4, offset = 0x4, fixed_abs, tag = 'smem constant byte address 0x4 - core index']
  #allocation1 [shape = 'u32[72,128]{1,0:T(1,128)}', space=vmem, size = 0x9000, scoped, tag = 'internal scratch']
  %s0 = inlined_call_operand.vmem [shape: f32[16,128], index: 0, kind: input, shape index: {}]
  %s1 = inlined_call_operand.hbm [shape: f32[128,128], index: 1, kind: input, shape index: {}]
  %s2 = inlined_call_operand.vmem [shape: f32[1,128], index: 2, kind: input, shape index: {}]
  %s3 = inlined_call_operand.hbm [shape: f32[128,128], index: 3, kind: input, shape index: {}]
  %s4 = inlined_call_operand.vmem [shape: f32[1,128], index: 4, kind: input, shape index: {}]
  %s5 = inlined_call_operand.hbm [shape: f32[128,128], index: 5, kind: input, shape index: {}]
  %s6 = inlined_call_operand.vmem [shape: f32[1,128], index: 6, kind: input, shape index: {}]
  %s7 = inlined_call_operand.hbm [shape: f32[16,128], index: 7, kind: output, shape index: {}]
  %s8 = sld [smem:[#allocation0]]
  $region73: #{_ffn_forward.1} parent=0
    _
  %s10 = ssub.s32 1, %s8
  %s11 = scalar_select 0, %s10, %s8
  $region1: #{_ffn_forward.1} parent=0
    #allocation2 [shape = 'u8[65536]{0}', space=vmem, size = 0x10000, scoped, tag = 'input window, operand 1, single buffered']
    #allocation3 [shape = 's32[2]{0}', space=sflag, size = 0x8, scoped, tag = 'scoped memory for _ffn_forward.1']
    #allocation4 [shape = 's32[2]{0}', space=sflag, size = 0x8, scoped, tag = 'scoped memory for _ffn_forward.1']
    #allocation5 [shape = 'u8[65536]{0}', space=vmem, size = 0x10000, scoped, tag = 'input window, operand 3, single buffered']
    #allocation6 [shape = 's32[1]{0}', space=sflag, size = 0x4, scoped, tag = 'scoped memory for _ffn_forward.1']
    #allocation7 [shape = 'u8[65536]{0}', space=vmem, size = 0x10000, scoped, tag = 'input window, operand 5, single buffered']
    #allocation8 [shape = 'u8[8192]{0}', space=vmem, size = 0x2000, scoped, tag = 'output window, operand 0']
    %12 = vsyncpa [#allocation3], 0
    %13 = vsyncpa [#allocation6], 0
    %14 = vsyncpa [#allocation4], 0
    %s15 = scalar_lea.sflag [#allocation4], 1
    %16 = vsyncpa %s15, 0
    loop: start=0, step=1, limit=4
    $region2: #{_ffn_forward.1} parent=1 // loop_pre_header
      _
    $region3: #{_ffn_forward.1} parent=1 // loop_header
      %s18 = sphi 0, %s22
      %p19 = scmp.ge.s32.totalorder %s18, 4
      %s28 = sphi 0, %s30
      %s31 = sphi 0, %s28
      %s32 = sphi 0, %s31
      %s48 = sphi 0, %s32
      %s52 = sphi 0, %s52
      %s54 = sphi 0, %s52
      %s55 = sphi 0, %s54
      %s69 = sphi 0, %s55
      %s73 = sphi 0, %s73
      %s75 = sphi 0, %s73
      %s76 = sphi 0, %s75
      %s90 = sphi 0, %s76
      %s94 = sphi 0, %s94
      %s96 = sphi 0, %s94
      %s97 = sphi 0, %s96
      %s111 = sphi 0, %s97
      %s115 = sphi 0, %s115
      %s117 = sphi 0, %s115
      %s118 = sphi 0, %s117
      %s132 = sphi 0, %s118
      %s136 = sphi 0, %s136
      %s138 = sphi 0, %s136
      %s139 = sphi 0, %s138
      %s153 = sphi 0, %s139
      %s157 = sphi 0, %s157
      %s159 = sphi 0, %s157
      %s160 = sphi 0, %s159
      %s174 = sphi 0, %s160
      %s180 = sphi 0, %s182
      %s183 = sphi 0, %s180
      %s184 = sphi 0, %s183
      %s200 = sphi 0, %s184
    $region4: #{_ffn_forward.1} parent=1 // loop_header_branch
      %21 = sbr.rel (%p19) target = $region8
    $region5: #{_ffn_forward.1} parent=1 // loop_body
      %s23 = ssub.s32 %s18, 1
      %s24 = ssub.s32 %s18, 2
      %s25 = sadd.s32 %s18, 1
      %s26 = ssub.s32 %s18, %s25
      %p27 = scmp.eq.s32.totalorder %s26, 0
      %s29 = sadd.s32 %s28, 1
      %s30 = scalar_select %p27, %s28, %s29
      %p33 = pneg %p27
      %p34 = scmp.eq.s32.totalorder %s18, 1
      %p35 = por %p33, %p34
      %p36 = scmp.ne.s32.totalorder %s28, %s31
      %p37 = scmp.eq.s32.totalorder %s18, 0
      %p38 = por %p36, %p37
      %p39 = scmp.ne.s32.totalorder %s28, %s31
      %p40 = scmp.eq.s32.totalorder %s23, 1
      %p41 = por %p39, %p40
      %p42 = scmp.ne.s32.totalorder %s31, %s32
      %p43 = scmp.eq.s32.totalorder %s23, 0
      %p44 = por %p42, %p43
      %p45 = scmp.ne.s32.totalorder %s31, %s32
      %p46 = scmp.eq.s32.totalorder %s24, 1
      %p47 = por %p45, %p46
      %p49 = scmp.ne.s32.totalorder %s32, %s48
      %p50 = scmp.eq.s32.totalorder %s24, 0
      %p51 = por %p49, %p50
      %s53 = sadd.s32 %s52, 1
      %p56 = scmp.eq.s32.totalorder %s18, 1
      %p57 = scmp.ne.s32.totalorder %s52, %s54
      %p58 = scmp.eq.s32.totalorder %s18, 0
      %p59 = por %p57, %p58
      %p60 = scmp.ne.s32.totalorder %s52, %s54
      %p61 = scmp.eq.s32.totalorder %s23, 1
      %p62 = por %p60, %p61
      %p63 = scmp.ne.s32.totalorder %s54, %s55
      %p64 = scmp.eq.s32.totalorder %s23, 0
      %p65 = por %p63, %p64
      %p66 = scmp.ne.s32.totalorder %s54, %s55
      %p67 = scmp.eq.s32.totalorder %s24, 1
      %p68 = por %p66, %p67
      %p70 = scmp.ne.s32.totalorder %s55, %s69
      %p71 = scmp.eq.s32.totalorder %s24, 0
      %p72 = por %p70, %p71
      %s74 = sadd.s32 %s73, 1
      %p77 = scmp.eq.s32.totalorder %s18, 1
      %p78 = scmp.ne.s32.totalorder %s73, %s75
      %p79 = scmp.eq.s32.totalorder %s18, 0
      %p80 = por %p78, %p79
      %p81 = scmp.ne.s32.totalorder %s73, %s75
      %p82 = scmp.eq.s32.totalorder %s23, 1
      %p83 = por %p81, %p82
      %p84 = scmp.ne.s32.totalorder %s75, %s76
      %p85 = scmp.eq.s32.totalorder %s23, 0
      %p86 = por %p84, %p85
      %p87 = scmp.ne.s32.totalorder %s75, %s76
      %p88 = scmp.eq.s32.totalorder %s24, 1
      %p89 = por %p87, %p88
      %p91 = scmp.ne.s32.totalorder %s76, %s90
      %p92 = scmp.eq.s32.totalorder %s24, 0
      %p93 = por %p91, %p92
      %s95 = sadd.s32 %s94, 1
      %p98 = scmp.eq.s32.totalorder %s18, 1
      %p99 = scmp.ne.s32.totalorder %s94, %s96
      %p100 = scmp.eq.s32.totalorder %s18, 0
      %p101 = por %p99, %p100
      %p102 = scmp.ne.s32.totalorder %s94, %s96
      %p103 = scmp.eq.s32.totalorder %s23, 1
      %p104 = por %p102, %p103
      %p105 = scmp.ne.s32.totalorder %s96, %s97
      %p106 = scmp.eq.s32.totalorder %s23, 0
      %p107 = por %p105, %p106
      %p108 = scmp.ne.s32.totalorder %s96, %s97
      %p109 = scmp.eq.s32.totalorder %s24, 1
      %p110 = por %p108, %p109
      %p112 = scmp.ne.s32.totalorder %s97, %s111
      %p113 = scmp.eq.s32.totalorder %s24, 0
      %p114 = por %p112, %p113
      %s116 = sadd.s32 %s115, 1
      %p119 = scmp.eq.s32.totalorder %s18, 1
      %p120 = scmp.ne.s32.totalorder %s115, %s117
      %p121 = scmp.eq.s32.totalorder %s18, 0
      %p122 = por %p120, %p121
      %p123 = scmp.ne.s32.totalorder %s115, %s117
      %p124 = scmp.eq.s32.totalorder %s23, 1
      %p125 = por %p123, %p124
      %p126 = scmp.ne.s32.totalorder %s117, %s118
      %p127 = scmp.eq.s32.totalorder %s23, 0
      %p128 = por %p126, %p127
      %p129 = scmp.ne.s32.totalorder %s117, %s118
      %p130 = scmp.eq.s32.totalorder %s24, 1
      %p131 = por %p129, %p130
      %p133 = scmp.ne.s32.totalorder %s118, %s132
      %p134 = scmp.eq.s32.totalorder %s24, 0
      %p135 = por %p133, %p134
      %s137 = sadd.s32 %s136, 1
      %p140 = scmp.eq.s32.totalorder %s18, 1
      %p141 = scmp.ne.s32.totalorder %s136, %s138
      %p142 = scmp.eq.s32.totalorder %s18, 0
      %p143 = por %p141, %p142
      %p144 = scmp.ne.s32.totalorder %s136, %s138
      %p145 = scmp.eq.s32.totalorder %s23, 1
      %p146 = por %p144, %p145
      %p147 = scmp.ne.s32.totalorder %s138, %s139
      %p148 = scmp.eq.s32.totalorder %s23, 0
      %p149 = por %p147, %p148
      %p150 = scmp.ne.s32.totalorder %s138, %s139
      %p151 = scmp.eq.s32.totalorder %s24, 1
      %p152 = por %p150, %p151
      %p154 = scmp.ne.s32.totalorder %s139, %s153
      %p155 = scmp.eq.s32.totalorder %s24, 0
      %p156 = por %p154, %p155
      %s158 = sadd.s32 %s157, 1
      %p161 = scmp.eq.s32.totalorder %s18, 1
      %p162 = scmp.ne.s32.totalorder %s157, %s159
      %p163 = scmp.eq.s32.totalorder %s18, 0
      %p164 = por %p162, %p163
      %p165 = scmp.ne.s32.totalorder %s157, %s159
      %p166 = scmp.eq.s32.totalorder %s23, 1
      %p167 = por %p165, %p166
      %p168 = scmp.ne.s32.totalorder %s159, %s160
      %p169 = scmp.eq.s32.totalorder %s23, 0
      %p170 = por %p168, %p169
      %p171 = scmp.ne.s32.totalorder %s159, %s160
      %p172 = scmp.eq.s32.totalorder %s24, 1
      %p173 = por %p171, %p172
      %p175 = scmp.ne.s32.totalorder %s160, %s174
      %p176 = scmp.eq.s32.totalorder %s24, 0
      %p177 = por %p175, %p176
      %s178 = ssub.s32 %s18, %s25
      %p179 = scmp.eq.s32.totalorder %s178, 0
      %s181 = sadd.s32 %s180, 1
      %s182 = scalar_select %p179, %s180, %s181
      %p185 = pneg %p179
      %p186 = scmp.eq.s32.totalorder %s18, 1
      %p187 = por %p185, %p186
      %p188 = scmp.ne.s32.totalorder %s180, %s183
      %p189 = scmp.eq.s32.totalorder %s18, 0
      %p190 = por %p188, %p189
      %p191 = scmp.ne.s32.totalorder %s180, %s183
      %p192 = scmp.eq.s32.totalorder %s23, 1
      %p193 = por %p191, %p192
      %p194 = scmp.ne.s32.totalorder %s183, %s184
      %p195 = scmp.eq.s32.totalorder %s23, 0
      %p196 = por %p194, %p195
      %p197 = scmp.ne.s32.totalorder %s183, %s184
      %p198 = scmp.eq.s32.totalorder %s24, 1
      %p199 = por %p197, %p198
      %p201 = scmp.ne.s32.totalorder %s184, %s200
      %p202 = scmp.eq.s32.totalorder %s24, 0
      %p203 = por %p201, %p202
      %p204 = scmp.le.s32.totalorder 1, %s18
      %p205 = scmp.lt.s32.totalorder %s18, 3
      %p206 = pnand %p204, %p205
      %p207 = pneg %p206
      // Predicated region
      $region9: #{_ffn_forward.1} parent=5 // pred_check
        _
      $region10: #{_ffn_forward.1} parent=5 // pred_check_branch
        %209 = sbr.rel (%p206) target = $region12
      $region11: #{_ffn_forward.1} parent=5 // pred_region
        %s210 = ssub.s32 %s18, 1
        // Predicated region
        $region13: #{_ffn_forward.1} parent=11 // pred_check
          %p211 = pneg %p65
        $region14: #{_ffn_forward.1} parent=11 // pred_check_branch
          %213 = sbr.rel (%p211) target = $region16
        $region15: #{_ffn_forward.1} parent=11 // pred_region
          %215 = vsyncadd [#allocation3], 0
          %s216 = sshll.u32 %s1, 4
          %s217 = int_to_ptr.hbm [resolvable:$true] %s216
          %s218 = sshll.u32 [#allocation2], 4
          %s219 = int_to_ptr.vmem [resolvable:$true] %s218
          %224 = dma.hbm_to_vmem [thread:$0]  %s217, 2048, %s219, [#allocation3], 128, 128, 8
        $region16: #{_ffn_forward.1} parent=11 // pred_fallthru
          _
        // Predicated region
        $region17: #{_ffn_forward.1} parent=11 // pred_check
          %p225 = pneg %p86
        $region18: #{_ffn_forward.1} parent=11 // pred_check_branch
          %227 = sbr.rel (%p225) target = $region20
        $region19: #{_ffn_forward.1} parent=11 // pred_region
          _
        $region20: #{_ffn_forward.1} parent=11 // pred_fallthru
          _
        // Predicated region
        $region21: #{_ffn_forward.1} parent=11 // pred_check
          %p228 = pneg %p107
        $region22: #{_ffn_forward.1} parent=11 // pred_check_branch
          %230 = sbr.rel (%p228) target = $region24
        $region23: #{_ffn_forward.1} parent=11 // pred_region
          %232 = vsyncadd [#allocation6], 0
          %s233 = sshll.u32 %s3, 4
          %s234 = int_to_ptr.hbm [resolvable:$true] %s233
          %s235 = sshll.u32 [#allocation5], 4
          %s236 = int_to_ptr.vmem [resolvable:$true] %s235
          %241 = dma.hbm_to_vmem [thread:$0]  %s234, 2048, %s236, [#allocation6], 128, 128, 8
        $region24: #{_ffn_forward.1} parent=11 // pred_fallthru
          _
        // Predicated region
        $region25: #{_ffn_forward.1} parent=11 // pred_check
          %p242 = pneg %p128
        $region26: #{_ffn_forward.1} parent=11 // pred_check_branch
          %244 = sbr.rel (%p242) target = $region28
        $region27: #{_ffn_forward.1} parent=11 // pred_region
          _
        $region28: #{_ffn_forward.1} parent=11 // pred_fallthru
          _
        // Predicated region
        $region29: #{_ffn_forward.1} parent=11 // pred_check
          %p245 = pneg %p149
        $region30: #{_ffn_forward.1} parent=11 // pred_check_branch
          %247 = sbr.rel (%p245) target = $region32
        $region31: #{_ffn_forward.1} parent=11 // pred_region
          %249 = vsyncadd [#allocation6], 0
          %s250 = sshll.u32 %s5, 4
          %s251 = int_to_ptr.hbm [resolvable:$true] %s250
          %s252 = sshll.u32 [#allocation7], 4
          %s253 = int_to_ptr.vmem [resolvable:$true] %s252
          %258 = dma.hbm_to_vmem [thread:$0]  %s251, 2048, %s253, [#allocation6], 128, 128, 8
        $region32: #{_ffn_forward.1} parent=11 // pred_fallthru
          _
        // Predicated region
        $region33: #{_ffn_forward.1} parent=11 // pred_check
          %p259 = pneg %p170
        $region34: #{_ffn_forward.1} parent=11 // pred_check_branch
          %261 = sbr.rel (%p259) target = $region36
        $region35: #{_ffn_forward.1} parent=11 // pred_region
          _
        $region36: #{_ffn_forward.1} parent=11 // pred_fallthru
          _
      $region12: #{_ffn_forward.1} parent=5 // pred_fallthru
        _
      %p262 = scmp.lt.s32.totalorder %s18, 2
      // Predicated region
      $region37: #{_ffn_forward.1} parent=5 // pred_check
        %p263 = pneg %p262
      $region38: #{_ffn_forward.1} parent=5 // pred_check_branch
        %265 = sbr.rel (%p263) target = $region40
      $region39: #{_ffn_forward.1} parent=5 // pred_region
        // Predicated region
        $region41: #{_ffn_forward.1} parent=39 // pred_check
          %p266 = pneg %p38
        $region42: #{_ffn_forward.1} parent=39 // pred_check_branch
          %268 = sbr.rel (%p266) target = $region44
        $region43: #{_ffn_forward.1} parent=39 // pred_region
          %p269 = scmp.lt.s32.totalorder %s18, 1
          %s270 = scalar_select %p269, %s18, 1
          %s271 = smul.addr %s270, 8
          %s272 = scalar_lea.vmem %s0, %s271
        $region44: #{_ffn_forward.1} parent=39 // pred_fallthru
          _
      $region40: #{_ffn_forward.1} parent=5 // pred_fallthru
        _
      %p273 = scmp.le.s32.totalorder 1, %s18
      %p274 = scmp.lt.s32.totalorder %s18, 3
      %p275 = pnand %p273, %p274
      %p276 = pneg %p275
      // Predicated region
      $region45: #{_ffn_forward.1} parent=5 // pred_check
        _
      $region46: #{_ffn_forward.1} parent=5 // pred_check_branch
        %278 = sbr.rel (%p275) target = $region48
      $region47: #{_ffn_forward.1} parent=5 // pred_region
        %s279 = ssub.s32 %s18, 1
        // Predicated region
        $region49: #{_ffn_forward.1} parent=47 // pred_check
          %p280 = pneg %p65
        $region50: #{_ffn_forward.1} parent=47 // pred_check_branch
          %282 = sbr.rel (%p280) target = $region52
        $region51: #{_ffn_forward.1} parent=47 // pred_region
          %284 = dma.done [#allocation3], 2048
        $region52: #{_ffn_forward.1} parent=47 // pred_fallthru
          _
        // Predicated region
        $region53: #{_ffn_forward.1} parent=47 // pred_check
          %p285 = pneg %p107
        $region54: #{_ffn_forward.1} parent=47 // pred_check_branch
          %287 = sbr.rel (%p285) target = $region56
        $region55: #{_ffn_forward.1} parent=47 // pred_region
          %289 = dma.done [#allocation6], 2048
        $region56: #{_ffn_forward.1} parent=47 // pred_fallthru
          _
        // Predicated region
        $region57: #{_ffn_forward.1} parent=47 // pred_check
          %p290 = pneg %p149
        $region58: #{_ffn_forward.1} parent=47 // pred_check_branch
          %292 = sbr.rel (%p290) target = $region60
        $region59: #{_ffn_forward.1} parent=47 // pred_region
          %294 = dma.done [#allocation6], 2048
        $region60: #{_ffn_forward.1} parent=47 // pred_fallthru
          _
        %p295 = scmp.lt.s32.totalorder %s23, 1
        %s296 = scalar_select %p295, %s23, 1
        %s297 = smul.addr %s296, 8
        %s298 = scalar_lea.vmem %s0, %s297
        %p299 = pneg %p44
        %p300 = pneg %p41
        %p301 = pneg %p65
        %p302 = pneg %p62
        %p303 = pneg %p86
        %p304 = pneg %p83
        %p305 = pneg %p107
        %p306 = pneg %p104
        %p307 = pneg %p128
        %p308 = pneg %p125
        %p309 = pneg %p149
        %p310 = pneg %p146
        %p311 = pneg %p170
        %p312 = pneg %p167
        %p313 = pneg %p196
        %p314 = pneg %p193
        %s315 = sand.u32 %s183, 1
        %s316 = scalar_lea.sflag [#allocation4], %s315
        %s317 = sand.u32 %s183, 1
        %s318 = smul.addr %s317, 8
        %s319 = scalar_lea.vmem [#allocation8], %s318
        %p320 = scmp.lt.s32.totalorder %s23, 1
        %s321 = scalar_select %p320, %s23, 1
        %s322 = smul.addr %s321, 8
        %s323 = scalar_lea.vmem %s0, %s322
        %v324 = vld [vmem:[%s323] sm:$0xff]
        %v325 = vld [vmem:[#allocation2] sm:$0xff]
        %v326 = vld [vmem:[#allocation2 + $0x8] sm:$0xff]
        %v327 = vld [vmem:[#allocation2 + $0x10] sm:$0xff]
        %v328 = vld [vmem:[#allocation2 + $0x18] sm:$0xff]
        %v329 = vld [vmem:[#allocation2 + $0x20] sm:$0xff]
        %v330 = vld [vmem:[#allocation2 + $0x28] sm:$0xff]
        %v331 = vld [vmem:[#allocation2 + $0x30] sm:$0xff]
        %v332 = vld [vmem:[#allocation2 + $0x38] sm:$0xff]
        %v333 = vld [vmem:[#allocation2 + $0x40] sm:$0xff]
        %v334 = vld [vmem:[#allocation2 + $0x48] sm:$0xff]
        %v335 = vld [vmem:[#allocation2 + $0x50] sm:$0xff]
        %v336 = vld [vmem:[#allocation2 + $0x58] sm:$0xff]
        %v337 = vld [vmem:[#allocation2 + $0x60] sm:$0xff]
        %v338 = vld [vmem:[#allocation2 + $0x68] sm:$0xff]
        %v339 = vld [vmem:[#allocation2 + $0x70] sm:$0xff]
        %v340 = vld [vmem:[#allocation2 + $0x78] sm:$0xff]
        %v341 = vld [vmem:[%s2] sm:$0x1]
        %v343 = vperm.slane %v341, 0
        %v345 = vand.u32 %v340, 4294901760
        %346 = vmatpush.msra.mxu0 %v345
        %v347 = vand.u32 %v339, 4294901760
        %348 = vmatpush.msra.mxu0 %v347
        %v349 = vand.u32 %v338, 4294901760
        %350 = vmatpush.msra.mxu0 %v349
        %v351 = vand.u32 %v337, 4294901760
        %352 = vmatpush.msra.mxu0 %v351
        %v353 = vand.u32 %v336, 4294901760
        %354 = vmatpush.msra.mxu0 %v353
        %v355 = vand.u32 %v335, 4294901760
        %356 = vmatpush.msra.mxu0 %v355
        %v357 = vand.u32 %v334, 4294901760
        %358 = vmatpush.msra.mxu0 %v357
        %v359 = vand.u32 %v333, 4294901760
        %360 = vmatpush.msra.mxu0 %v359
        %v361 = vand.u32 %v332, 4294901760
        %362 = vmatpush.msra.mxu0 %v361
        %v363 = vand.u32 %v331, 4294901760
        %364 = vmatpush.msra.mxu0 %v363
        %v365 = vand.u32 %v330, 4294901760
        %366 = vmatpush.msra.mxu0 %v365
        %v367 = vand.u32 %v329, 4294901760
        %368 = vmatpush.msra.mxu0 %v367
        %v369 = vand.u32 %v328, 4294901760
        %370 = vmatpush.msra.mxu0 %v369
        %v371 = vand.u32 %v327, 4294901760
        %372 = vmatpush.msra.mxu0 %v371
        %v373 = vand.u32 %v326, 4294901760
        %374 = vmatpush.msra.mxu0 %v373
        %v375 = vand.u32 %v325, 4294901760
        %376 = vmatpush.msra.mxu0 %v375
        %v377 = vand.u32 %v324, 4294901760
        %v378 = vsub.f32 %v324, %v377
        %v379 = vand.u32 %v378, 4294901760
        %v380 = vsub.f32 %v378, %v379
        %v381 = vand.u32 %v380, 4294901760
        %382 = vmatmul.f32.gmra.mxu0 %v381
        %v383 = vpop.f32.mrf.mxu0
        %v384 = vadd.f32 %v343, %v383
        %385 = vdwg.mxu0
        %v386 = vand.u32 %v340, 4294901760
        %v387 = vsub.f32 %v340, %v386
        %v388 = vand.u32 %v387, 4294901760
        %v389 = vsub.f32 %v387, %v388
        %v390 = vand.u32 %v389, 4294901760
        %391 = vmatpush.msra.mxu0 %v390
        %v392 = vand.u32 %v339, 4294901760
        %v393 = vsub.f32 %v339, %v392
        %v394 = vand.u32 %v393, 4294901760
        %v395 = vsub.f32 %v393, %v394
        %v396 = vand.u32 %v395, 4294901760
        %397 = vmatpush.msra.mxu0 %v396
        %v398 = vand.u32 %v338, 4294901760
        %v399 = vsub.f32 %v338, %v398
        %v400 = vand.u32 %v399, 4294901760
        %v401 = vsub.f32 %v399, %v400
        %v402 = vand.u32 %v401, 4294901760
        %403 = vmatpush.msra.mxu0 %v402
        %v404 = vand.u32 %v337, 4294901760
        %v405 = vsub.f32 %v337, %v404
        %v406 = vand.u32 %v405, 4294901760
        %v407 = vsub.f32 %v405, %v406
        %v408 = vand.u32 %v407, 4294901760
        %409 = vmatpush.msra.mxu0 %v408
        %v410 = vand.u32 %v336, 4294901760
        %v411 = vsub.f32 %v336, %v410
        %v412 = vand.u32 %v411, 4294901760
        %v413 = vsub.f32 %v411, %v412
        %v414 = vand.u32 %v413, 4294901760
        %415 = vmatpush.msra.mxu0 %v414
        %v416 = vand.u32 %v335, 4294901760
        %v417 = vsub.f32 %v335, %v416
        %v418 = vand.u32 %v417, 4294901760
        %v419 = vsub.f32 %v417, %v418
        %v420 = vand.u32 %v419, 4294901760
        %421 = vmatpush.msra.mxu0 %v420
        %v422 = vand.u32 %v334, 4294901760
        %v423 = vsub.f32 %v334, %v422
        %v424 = vand.u32 %v423, 4294901760
        %v425 = vsub.f32 %v423, %v424
        %v426 = vand.u32 %v425, 4294901760
        %427 = vmatpush.msra.mxu0 %v426
        %v428 = vand.u32 %v333, 4294901760
        %v429 = vsub.f32 %v333, %v428
        %v430 = vand.u32 %v429, 4294901760
        %v431 = vsub.f32 %v429, %v430
        %v432 = vand.u32 %v431, 4294901760
        %433 = vmatpush.msra.mxu0 %v432
        %v434 = vand.u32 %v332, 4294901760
        %v435 = vsub.f32 %v332, %v434
        %v436 = vand.u32 %v435, 4294901760
        %v437 = vsub.f32 %v435, %v436
        %v438 = vand.u32 %v437, 4294901760
        %439 = vmatpush.msra.mxu0 %v438
        %v440 = vand.u32 %v331, 4294901760
        %v441 = vsub.f32 %v331, %v440
        %v442 = vand.u32 %v441, 4294901760
        %v443 = vsub.f32 %v441, %v442
        %v444 = vand.u32 %v443, 4294901760
        %445 = vmatpush.msra.mxu0 %v444
        %v446 = vand.u32 %v330, 4294901760
        %v447 = vsub.f32 %v330, %v446
        %v448 = vand.u32 %v447, 4294901760
        %v449 = vsub.f32 %v447, %v448
        %v450 = vand.u32 %v449, 4294901760
        %451 = vmatpush.msra.mxu0 %v450
        %v452 = vand.u32 %v329, 4294901760
        %v453 = vsub.f32 %v329, %v452
        %v454 = vand.u32 %v453, 4294901760
        %v455 = vsub.f32 %v453, %v454
        %v456 = vand.u32 %v455, 4294901760
        %457 = vmatpush.msra.mxu0 %v456
        %v458 = vand.u32 %v328, 4294901760
        %v459 = vsub.f32 %v328, %v458
        %v460 = vand.u32 %v459, 4294901760
        %v461 = vsub.f32 %v459, %v460
        %v462 = vand.u32 %v461, 4294901760
        %463 = vmatpush.msra.mxu0 %v462
        %v464 = vand.u32 %v327, 4294901760
        %v465 = vsub.f32 %v327, %v464
        %v466 = vand.u32 %v465, 4294901760
        %v467 = vsub.f32 %v465, %v466
        %v468 = vand.u32 %v467, 4294901760
        %469 = vmatpush.msra.mxu0 %v468
        %v470 = vand.u32 %v326, 4294901760
        %v471 = vsub.f32 %v326, %v470
        %v472 = vand.u32 %v471, 4294901760
        %v473 = vsub.f32 %v471, %v472
        %v474 = vand.u32 %v473, 4294901760
        %475 = vmatpush.msra.mxu0 %v474
        %v476 = vand.u32 %v325, 4294901760
        %v477 = vsub.f32 %v325, %v476
        %v478 = vand.u32 %v477, 4294901760
        %v479 = vsub.f32 %v477, %v478
        %v480 = vand.u32 %v479, 4294901760
        %481 = vmatpush.msra.mxu0 %v480
        %v482 = vand.u32 %v324, 4294901760
        %483 = vmatmul.f32.gmra.mxu0 %v482
        %v484 = vpop.f32.mrf.mxu0
        %v485 = vadd.f32 %v384, %v484
        %486 = vdwg.mxu0
        %v487 = vand.u32 %v340, 4294901760
        %v488 = vsub.f32 %v340, %v487
        %489 = vmatpush.msra.mxu0 %v488
        %v490 = vand.u32 %v339, 4294901760
        %v491 = vsub.f32 %v339, %v490
        %492 = vmatpush.msra.mxu0 %v491
        %v493 = vand.u32 %v338, 4294901760
        %v494 = vsub.f32 %v338, %v493
        %495 = vmatpush.msra.mxu0 %v494
        %v496 = vand.u32 %v337, 4294901760
        %v497 = vsub.f32 %v337, %v496
        %498 = vmatpush.msra.mxu0 %v497
        %v499 = vand.u32 %v336, 4294901760
        %v500 = vsub.f32 %v336, %v499
        %501 = vmatpush.msra.mxu0 %v500
        %v502 = vand.u32 %v335, 4294901760
        %v503 = vsub.f32 %v335, %v502
        %504 = vmatpush.msra.mxu0 %v503
        %v505 = vand.u32 %v334, 4294901760
        %v506 = vsub.f32 %v334, %v505
        %507 = vmatpush.msra.mxu0 %v506
        %v508 = vand.u32 %v333, 4294901760
        %v509 = vsub.f32 %v333, %v508
        %510 = vmatpush.msra.mxu0 %v509
        %v511 = vand.u32 %v332, 4294901760
        %v512 = vsub.f32 %v332, %v511
        %513 = vmatpush.msra.mxu0 %v512
        %v514 = vand.u32 %v331, 4294901760
        %v515 = vsub.f32 %v331, %v514
        %516 = vmatpush.msra.mxu0 %v515
        %v517 = vand.u32 %v330, 4294901760
        %v518 = vsub.f32 %v330, %v517
        %519 = vmatpush.msra.mxu0 %v518
        %v520 = vand.u32 %v329, 4294901760
        %v521 = vsub.f32 %v329, %v520
        %522 = vmatpush.msra.mxu0 %v521
        %v523 = vand.u32 %v328, 4294901760
        %v524 = vsub.f32 %v328, %v523
        %525 = vmatpush.msra.mxu0 %v524
        %v526 = vand.u32 %v327, 4294901760
        %v527 = vsub.f32 %v327, %v526
        %528 = vmatpush.msra.mxu0 %v527
        %v529 = vand.u32 %v326, 4294901760
        %v530 = vsub.f32 %v326, %v529
        %531 = vmatpush.msra.mxu0 %v530
        %v532 = vand.u32 %v325, 4294901760
        %v533 = vsub.f32 %v325, %v532
        %534 = vmatpush.msra.mxu0 %v533
        %v535 = vand.u32 %v324, 4294901760
        %v536 = vsub.f32 %v324, %v535
        %537 = vmatmul.f32.gmra.mxu0 %v536
        %v538 = vpop.f32.mrf.mxu0
        %v539 = vadd.f32 %v485, %v538
        %540 = vdwg.mxu0
        %v541 = vand.u32 %v340, 4294901760
        %542 = vmatpush.msra.mxu0 %v541
        %v543 = vand.u32 %v339, 4294901760
        %544 = vmatpush.msra.mxu0 %v543
        %v545 = vand.u32 %v338, 4294901760
        %546 = vmatpush.msra.mxu0 %v545
        %v547 = vand.u32 %v337, 4294901760
        %548 = vmatpush.msra.mxu0 %v547
        %v549 = vand.u32 %v336, 4294901760
        %550 = vmatpush.msra.mxu0 %v549
        %v551 = vand.u32 %v335, 4294901760
        %552 = vmatpush.msra.mxu0 %v551
        %v553 = vand.u32 %v334, 4294901760
        %554 = vmatpush.msra.mxu0 %v553
        %v555 = vand.u32 %v333, 4294901760
        %556 = vmatpush.msra.mxu0 %v555
        %v557 = vand.u32 %v332, 4294901760
        %558 = vmatpush.msra.mxu0 %v557
        %v559 = vand.u32 %v331, 4294901760
        %560 = vmatpush.msra.mxu0 %v559
        %v561 = vand.u32 %v330, 4294901760
        %562 = vmatpush.msra.mxu0 %v561
        %v563 = vand.u32 %v329, 4294901760
        %564 = vmatpush.msra.mxu0 %v563
        %v565 = vand.u32 %v328, 4294901760
        %566 = vmatpush.msra.mxu0 %v565
        %v567 = vand.u32 %v327, 4294901760
        %568 = vmatpush.msra.mxu0 %v567
        %v569 = vand.u32 %v326, 4294901760
        %570 = vmatpush.msra.mxu0 %v569
        %v571 = vand.u32 %v325, 4294901760
        %572 = vmatpush.msra.mxu0 %v571
        %v573 = vand.u32 %v324, 4294901760
        %v574 = vsub.f32 %v324, %v573
        %v575 = vand.u32 %v574, 4294901760
        %576 = vmatmul.f32.gmra.mxu0 %v575
        %v577 = vpop.f32.mrf.mxu0
        %v578 = vadd.f32 %v539, %v577
        %579 = vdwg.mxu0
        %v580 = vand.u32 %v340, 4294901760
        %v581 = vsub.f32 %v340, %v580
        %v582 = vand.u32 %v581, 4294901760
        %583 = vmatpush.msra.mxu0 %v582
        %v584 = vand.u32 %v339, 4294901760
        %v585 = vsub.f32 %v339, %v584
        %v586 = vand.u32 %v585, 4294901760
        %587 = vmatpush.msra.mxu0 %v586
        %v588 = vand.u32 %v338, 4294901760
        %v589 = vsub.f32 %v338, %v588
        %v590 = vand.u32 %v589, 4294901760
        %591 = vmatpush.msra.mxu0 %v590
        %v592 = vand.u32 %v337, 4294901760
        %v593 = vsub.f32 %v337, %v592
        %v594 = vand.u32 %v593, 4294901760
        %595 = vmatpush.msra.mxu0 %v594
        %v596 = vand.u32 %v336, 4294901760
        %v597 = vsub.f32 %v336, %v596
        %v598 = vand.u32 %v597, 4294901760
        %599 = vmatpush.msra.mxu0 %v598
        %v600 = vand.u32 %v335, 4294901760
        %v601 = vsub.f32 %v335, %v600
        %v602 = vand.u32 %v601, 4294901760
        %603 = vmatpush.msra.mxu0 %v602
        %v604 = vand.u32 %v334, 4294901760
        %v605 = vsub.f32 %v334, %v604
        %v606 = vand.u32 %v605, 4294901760
        %607 = vmatpush.msra.mxu0 %v606
        %v608 = vand.u32 %v333, 4294901760
        %v609 = vsub.f32 %v333, %v608
        %v610 = vand.u32 %v609, 4294901760
        %611 = vmatpush.msra.mxu0 %v610
        %v612 = vand.u32 %v332, 4294901760
        %v613 = vsub.f32 %v332, %v612
        %v614 = vand.u32 %v613, 4294901760
        %615 = vmatpush.msra.mxu0 %v614
        %v616 = vand.u32 %v331, 4294901760
        %v617 = vsub.f32 %v331, %v616
        %v618 = vand.u32 %v617, 4294901760
        %619 = vmatpush.msra.mxu0 %v618
        %v620 = vand.u32 %v330, 4294901760
        %v621 = vsub.f32 %v330, %v620
        %v622 = vand.u32 %v621, 4294901760
        %623 = vmatpush.msra.mxu0 %v622
        %v624 = vand.u32 %v329, 4294901760
        %v625 = vsub.f32 %v329, %v624
        %v626 = vand.u32 %v625, 4294901760
        %627 = vmatpush.msra.mxu0 %v626
        %v628 = vand.u32 %v328, 4294901760
        %v629 = vsub.f32 %v328, %v628
        %v630 = vand.u32 %v629, 4294901760
        %631 = vmatpush.msra.mxu0 %v630
        %v632 = vand.u32 %v327, 4294901760
        %v633 = vsub.f32 %v327, %v632
        %v634 = vand.u32 %v633, 4294901760
        %635 = vmatpush.msra.mxu0 %v634
        %v636 = vand.u32 %v326, 4294901760
        %v637 = vsub.f32 %v326, %v636
        %v638 = vand.u32 %v637, 4294901760
        %639 = vmatpush.msra.mxu0 %v638
        %v640 = vand.u32 %v325, 4294901760
        %v641 = vsub.f32 %v325, %v640
        %v642 = vand.u32 %v641, 4294901760
        %643 = vmatpush.msra.mxu0 %v642
        %v644 = vand.u32 %v324, 4294901760
        %645 = vmatmul.f32.gmra.mxu0 %v644
        %v646 = vpop.f32.mrf.mxu0
        %v647 = vadd.f32 %v578, %v646
        %648 = vdwg.mxu0
        %v649 = vand.u32 %v340, 4294901760
        %650 = vmatpush.msra.mxu0 %v649
        %v651 = vand.u32 %v339, 4294901760
        %652 = vmatpush.msra.mxu0 %v651
        %v653 = vand.u32 %v338, 4294901760
        %654 = vmatpush.msra.mxu0 %v653
        %v655 = vand.u32 %v337, 4294901760
        %656 = vmatpush.msra.mxu0 %v655
        %v657 = vand.u32 %v336, 4294901760
        %658 = vmatpush.msra.mxu0 %v657
        %v659 = vand.u32 %v335, 4294901760
        %660 = vmatpush.msra.mxu0 %v659
        %v661 = vand.u32 %v334, 4294901760
        %662 = vmatpush.msra.mxu0 %v661
        %v663 = vand.u32 %v333, 4294901760
        %664 = vmatpush.msra.mxu0 %v663
        %v665 = vand.u32 %v332, 4294901760
        %666 = vmatpush.msra.mxu0 %v665
        %v667 = vand.u32 %v331, 4294901760
        %668 = vmatpush.msra.mxu0 %v667
        %v669 = vand.u32 %v330, 4294901760
        %670 = vmatpush.msra.mxu0 %v669
        %v671 = vand.u32 %v329, 4294901760
        %672 = vmatpush.msra.mxu0 %v671
        %v673 = vand.u32 %v328, 4294901760
        %674 = vmatpush.msra.mxu0 %v673
        %v675 = vand.u32 %v327, 4294901760
        %676 = vmatpush.msra.mxu0 %v675
        %v677 = vand.u32 %v326, 4294901760
        %678 = vmatpush.msra.mxu0 %v677
        %v679 = vand.u32 %v325, 4294901760
        %680 = vmatpush.msra.mxu0 %v679
        %v681 = vand.u32 %v324, 4294901760
        %682 = vmatmul.f32.gmra.mxu0 %v681
        %v683 = vpop.f32.mrf.mxu0
        %v684 = vadd.f32 %v647, %v683
        %685 = vdwg.mxu0
        %v686 = vmax.f32 %v684, 0.0
        %v687 = vld [vmem:[#allocation5] sm:$0xff]
        %v688 = vld [vmem:[#allocation5 + $0x8] sm:$0xff]
        %v689 = vld [vmem:[#allocation5 + $0x10] sm:$0xff]
        %v690 = vld [vmem:[#allocation5 + $0x18] sm:$0xff]
        %v691 = vld [vmem:[#allocation5 + $0x20] sm:$0xff]
        %v692 = vld [vmem:[#allocation5 + $0x28] sm:$0xff]
        %v693 = vld [vmem:[#allocation5 + $0x30] sm:$0xff]
        %v694 = vld [vmem:[#allocation5 + $0x38] sm:$0xff]
        %v695 = vld [vmem:[#allocation5 + $0x40] sm:$0xff]
        %v696 = vld [vmem:[#allocation5 + $0x48] sm:$0xff]
        %v697 = vld [vmem:[#allocation5 + $0x50] sm:$0xff]
        %v698 = vld [vmem:[#allocation5 + $0x58] sm:$0xff]
        %v699 = vld [vmem:[#allocation5 + $0x60] sm:$0xff]
        %v700 = vld [vmem:[#allocation5 + $0x68] sm:$0xff]
        %v701 = vld [vmem:[#allocation5 + $0x70] sm:$0xff]
        %v702 = vld [vmem:[#allocation5 + $0x78] sm:$0xff]
        %v703 = vld [vmem:[%s4] sm:$0x1]
        %v705 = vperm.slane %v703, 0
        %v707 = vand.u32 %v702, 4294901760
        %708 = vmatpush.msra.mxu0 %v707
        %v709 = vand.u32 %v701, 4294901760
        %710 = vmatpush.msra.mxu0 %v709
        %v711 = vand.u32 %v700, 4294901760
        %712 = vmatpush.msra.mxu0 %v711
        %v713 = vand.u32 %v699, 4294901760
        %714 = vmatpush.msra.mxu0 %v713
        %v715 = vand.u32 %v698, 4294901760
        %716 = vmatpush.msra.mxu0 %v715
        %v717 = vand.u32 %v697, 4294901760
        %718 = vmatpush.msra.mxu0 %v717
        %v719 = vand.u32 %v696, 4294901760
        %720 = vmatpush.msra.mxu0 %v719
        %v721 = vand.u32 %v695, 4294901760
        %722 = vmatpush.msra.mxu0 %v721
        %v723 = vand.u32 %v694, 4294901760
        %724 = vmatpush.msra.mxu0 %v723
        %v725 = vand.u32 %v693, 4294901760
        %726 = vmatpush.msra.mxu0 %v725
        %v727 = vand.u32 %v692, 4294901760
        %728 = vmatpush.msra.mxu0 %v727
        %v729 = vand.u32 %v691, 4294901760
        %730 = vmatpush.msra.mxu0 %v729
        %v731 = vand.u32 %v690, 4294901760
        %732 = vmatpush.msra.mxu0 %v731
        %v733 = vand.u32 %v689, 4294901760
        %734 = vmatpush.msra.mxu0 %v733
        %v735 = vand.u32 %v688, 4294901760
        %736 = vmatpush.msra.mxu0 %v735
        %v737 = vand.u32 %v687, 4294901760
        %738 = vmatpush.msra.mxu0 %v737
        %v739 = vand.u32 %v686, 4294901760
        %v740 = vsub.f32 %v686, %v739
        %v741 = vand.u32 %v740, 4294901760
        %v742 = vsub.f32 %v740, %v741
        %v743 = vand.u32 %v742, 4294901760
        %744 = vmatmul.f32.gmra.mxu0 %v743
        %v745 = vpop.f32.mrf.mxu0
        %v746 = vadd.f32 %v705, %v745
        %747 = vdwg.mxu0
        %v748 = vand.u32 %v702, 4294901760
        %v749 = vsub.f32 %v702, %v748
        %v750 = vand.u32 %v749, 4294901760
        %v751 = vsub.f32 %v749, %v750
        %v752 = vand.u32 %v751, 4294901760
        %753 = vmatpush.msra.mxu0 %v752
        %v754 = vand.u32 %v701, 4294901760
        %v755 = vsub.f32 %v701, %v754
        %v756 = vand.u32 %v755, 4294901760
        %v757 = vsub.f32 %v755, %v756
        %v758 = vand.u32 %v757, 4294901760
        %759 = vmatpush.msra.mxu0 %v758
        %v760 = vand.u32 %v700, 4294901760
        %v761 = vsub.f32 %v700, %v760
        %v762 = vand.u32 %v761, 4294901760
        %v763 = vsub.f32 %v761, %v762
        %v764 = vand.u32 %v763, 4294901760
        %765 = vmatpush.msra.mxu0 %v764
        %v766 = vand.u32 %v699, 4294901760
        %v767 = vsub.f32 %v699, %v766
        %v768 = vand.u32 %v767, 4294901760
        %v769 = vsub.f32 %v767, %v768
        %v770 = vand.u32 %v769, 4294901760
        %771 = vmatpush.msra.mxu0 %v770
        %v772 = vand.u32 %v698, 4294901760
        %v773 = vsub.f32 %v698, %v772
        %v774 = vand.u32 %v773, 4294901760
        %v775 = vsub.f32 %v773, %v774
        %v776 = vand.u32 %v775, 4294901760
        %777 = vmatpush.msra.mxu0 %v776
        %v778 = vand.u32 %v697, 4294901760
        %v779 = vsub.f32 %v697, %v778
        %v780 = vand.u32 %v779, 4294901760
        %v781 = vsub.f32 %v779, %v780
        %v782 = vand.u32 %v781, 4294901760
        %783 = vmatpush.msra.mxu0 %v782
        %v784 = vand.u32 %v696, 4294901760
        %v785 = vsub.f32 %v696, %v784
        %v786 = vand.u32 %v785, 4294901760
        %v787 = vsub.f32 %v785, %v786
        %v788 = vand.u32 %v787, 4294901760
        %789 = vmatpush.msra.mxu0 %v788
        %v790 = vand.u32 %v695, 4294901760
        %v791 = vsub.f32 %v695, %v790
        %v792 = vand.u32 %v791, 4294901760
        %v793 = vsub.f32 %v791, %v792
        %v794 = vand.u32 %v793, 4294901760
        %795 = vmatpush.msra.mxu0 %v794
        %v796 = vand.u32 %v694, 4294901760
        %v797 = vsub.f32 %v694, %v796
        %v798 = vand.u32 %v797, 4294901760
        %v799 = vsub.f32 %v797, %v798
        %v800 = vand.u32 %v799, 4294901760
        %801 = vmatpush.msra.mxu0 %v800
        %v802 = vand.u32 %v693, 4294901760
        %v803 = vsub.f32 %v693, %v802
        %v804 = vand.u32 %v803, 4294901760
        %v805 = vsub.f32 %v803, %v804
        %v806 = vand.u32 %v805, 4294901760
        %807 = vmatpush.msra.mxu0 %v806
        %v808 = vand.u32 %v692, 4294901760
        %v809 = vsub.f32 %v692, %v808
        %v810 = vand.u32 %v809, 4294901760
        %v811 = vsub.f32 %v809, %v810
        %v812 = vand.u32 %v811, 4294901760
        %813 = vmatpush.msra.mxu0 %v812
        %v814 = vand.u32 %v691, 4294901760
        %v815 = vsub.f32 %v691, %v814
        %v816 = vand.u32 %v815, 4294901760
        %v817 = vsub.f32 %v815, %v816
        %v818 = vand.u32 %v817, 4294901760
        %819 = vmatpush.msra.mxu0 %v818
        %v820 = vand.u32 %v690, 4294901760
        %v821 = vsub.f32 %v690, %v820
        %v822 = vand.u32 %v821, 4294901760
        %v823 = vsub.f32 %v821, %v822
        %v824 = vand.u32 %v823, 4294901760
        %825 = vmatpush.msra.mxu0 %v824
        %v826 = vand.u32 %v689, 4294901760
        %v827 = vsub.f32 %v689, %v826
        %v828 = vand.u32 %v827, 4294901760
        %v829 = vsub.f32 %v827, %v828
        %v830 = vand.u32 %v829, 4294901760
        %831 = vmatpush.msra.mxu0 %v830
        %v832 = vand.u32 %v688, 4294901760
        %v833 = vsub.f32 %v688, %v832
        %v834 = vand.u32 %v833, 4294901760
        %v835 = vsub.f32 %v833, %v834
        %v836 = vand.u32 %v835, 4294901760
        %837 = vmatpush.msra.mxu0 %v836
        %v838 = vand.u32 %v687, 4294901760
        %v839 = vsub.f32 %v687, %v838
        %v840 = vand.u32 %v839, 4294901760
        %v841 = vsub.f32 %v839, %v840
        %v842 = vand.u32 %v841, 4294901760
        %843 = vmatpush.msra.mxu0 %v842
        %v844 = vand.u32 %v686, 4294901760
        %845 = vmatmul.f32.gmra.mxu0 %v844
        %v846 = vpop.f32.mrf.mxu0
        %v847 = vadd.f32 %v746, %v846
        %848 = vdwg.mxu0
        %v849 = vand.u32 %v702, 4294901760
        %v850 = vsub.f32 %v702, %v849
        %851 = vmatpush.msra.mxu0 %v850
        %v852 = vand.u32 %v701, 4294901760
        %v853 = vsub.f32 %v701, %v852
        %854 = vmatpush.msra.mxu0 %v853
        %v855 = vand.u32 %v700, 4294901760
        %v856 = vsub.f32 %v700, %v855
        %857 = vmatpush.msra.mxu0 %v856
        %v858 = vand.u32 %v699, 4294901760
        %v859 = vsub.f32 %v699, %v858
        %860 = vmatpush.msra.mxu0 %v859
        %v861 = vand.u32 %v698, 4294901760
        %v862 = vsub.f32 %v698, %v861
        %863 = vmatpush.msra.mxu0 %v862
        %v864 = vand.u32 %v697, 4294901760
        %v865 = vsub.f32 %v697, %v864
        %866 = vmatpush.msra.mxu0 %v865
        %v867 = vand.u32 %v696, 4294901760
        %v868 = vsub.f32 %v696, %v867
        %869 = vmatpush.msra.mxu0 %v868
        %v870 = vand.u32 %v695, 4294901760
        %v871 = vsub.f32 %v695, %v870
        %872 = vmatpush.msra.mxu0 %v871
        %v873 = vand.u32 %v694, 4294901760
        %v874 = vsub.f32 %v694, %v873
        %875 = vmatpush.msra.mxu0 %v874
        %v876 = vand.u32 %v693, 4294901760
        %v877 = vsub.f32 %v693, %v876
        %878 = vmatpush.msra.mxu0 %v877
        %v879 = vand.u32 %v692, 4294901760
        %v880 = vsub.f32 %v692, %v879
        %881 = vmatpush.msra.mxu0 %v880
        %v882 = vand.u32 %v691, 4294901760
        %v883 = vsub.f32 %v691, %v882
        %884 = vmatpush.msra.mxu0 %v883
        %v885 = vand.u32 %v690, 4294901760
        %v886 = vsub.f32 %v690, %v885
        %887 = vmatpush.msra.mxu0 %v886
        %v888 = vand.u32 %v689, 4294901760
        %v889 = vsub.f32 %v689, %v888
        %890 = vmatpush.msra.mxu0 %v889
        %v891 = vand.u32 %v688, 4294901760
        %v892 = vsub.f32 %v688, %v891
        %893 = vmatpush.msra.mxu0 %v892
        %v894 = vand.u32 %v687, 4294901760
        %v895 = vsub.f32 %v687, %v894
        %896 = vmatpush.msra.mxu0 %v895
        %v897 = vand.u32 %v686, 4294901760
        %v898 = vsub.f32 %v686, %v897
        %899 = vmatmul.f32.gmra.mxu0 %v898
        %v900 = vpop.f32.mrf.mxu0
        %v901 = vadd.f32 %v847, %v900
        %902 = vdwg.mxu0
        %v903 = vand.u32 %v702, 4294901760
        %904 = vmatpush.msra.mxu0 %v903
        %v905 = vand.u32 %v701, 4294901760
        %906 = vmatpush.msra.mxu0 %v905
        %v907 = vand.u32 %v700, 4294901760
        %908 = vmatpush.msra.mxu0 %v907
        %v909 = vand.u32 %v699, 4294901760
        %910 = vmatpush.msra.mxu0 %v909
        %v911 = vand.u32 %v698, 4294901760
        %912 = vmatpush.msra.mxu0 %v911
        %v913 = vand.u32 %v697, 4294901760
        %914 = vmatpush.msra.mxu0 %v913
        %v915 = vand.u32 %v696, 4294901760
        %916 = vmatpush.msra.mxu0 %v915
        %v917 = vand.u32 %v695, 4294901760
        %918 = vmatpush.msra.mxu0 %v917
        %v919 = vand.u32 %v694, 4294901760
        %920 = vmatpush.msra.mxu0 %v919
        %v921 = vand.u32 %v693, 4294901760
        %922 = vmatpush.msra.mxu0 %v921
        %v923 = vand.u32 %v692, 4294901760
        %924 = vmatpush.msra.mxu0 %v923
        %v925 = vand.u32 %v691, 4294901760
        %926 = vmatpush.msra.mxu0 %v925
        %v927 = vand.u32 %v690, 4294901760
        %928 = vmatpush.msra.mxu0 %v927
        %v929 = vand.u32 %v689, 4294901760
        %930 = vmatpush.msra.mxu0 %v929
        %v931 = vand.u32 %v688, 4294901760
        %932 = vmatpush.msra.mxu0 %v931
        %v933 = vand.u32 %v687, 4294901760
        %934 = vmatpush.msra.mxu0 %v933
        %v935 = vand.u32 %v686, 4294901760
        %v936 = vsub.f32 %v686, %v935
        %v937 = vand.u32 %v936, 4294901760
        %938 = vmatmul.f32.gmra.mxu0 %v937
        %v939 = vpop.f32.mrf.mxu0
        %v940 = vadd.f32 %v901, %v939
        %941 = vdwg.mxu0
        %v942 = vand.u32 %v702, 4294901760
        %v943 = vsub.f32 %v702, %v942
        %v944 = vand.u32 %v943, 4294901760
        %945 = vmatpush.msra.mxu0 %v944
        %v946 = vand.u32 %v701, 4294901760
        %v947 = vsub.f32 %v701, %v946
        %v948 = vand.u32 %v947, 4294901760
        %949 = vmatpush.msra.mxu0 %v948
        %v950 = vand.u32 %v700, 4294901760
        %v951 = vsub.f32 %v700, %v950
        %v952 = vand.u32 %v951, 4294901760
        %953 = vmatpush.msra.mxu0 %v952
        %v954 = vand.u32 %v699, 4294901760
        %v955 = vsub.f32 %v699, %v954
        %v956 = vand.u32 %v955, 4294901760
        %957 = vmatpush.msra.mxu0 %v956
        %v958 = vand.u32 %v698, 4294901760
        %v959 = vsub.f32 %v698, %v958
        %v960 = vand.u32 %v959, 4294901760
        %961 = vmatpush.msra.mxu0 %v960
        %v962 = vand.u32 %v697, 4294901760
        %v963 = vsub.f32 %v697, %v962
        %v964 = vand.u32 %v963, 4294901760
        %965 = vmatpush.msra.mxu0 %v964
        %v966 = vand.u32 %v696, 4294901760
        %v967 = vsub.f32 %v696, %v966
        %v968 = vand.u32 %v967, 4294901760
        %969 = vmatpush.msra.mxu0 %v968
        %v970 = vand.u32 %v695, 4294901760
        %v971 = vsub.f32 %v695, %v970
        %v972 = vand.u32 %v971, 4294901760
        %973 = vmatpush.msra.mxu0 %v972
        %v974 = vand.u32 %v694, 4294901760
        %v975 = vsub.f32 %v694, %v974
        %v976 = vand.u32 %v975, 4294901760
        %977 = vmatpush.msra.mxu0 %v976
        %v978 = vand.u32 %v693, 4294901760
        %v979 = vsub.f32 %v693, %v978
        %v980 = vand.u32 %v979, 4294901760
        %981 = vmatpush.msra.mxu0 %v980
        %v982 = vand.u32 %v692, 4294901760
        %v983 = vsub.f32 %v692, %v982
        %v984 = vand.u32 %v983, 4294901760
        %985 = vmatpush.msra.mxu0 %v984
        %v986 = vand.u32 %v691, 4294901760
        %v987 = vsub.f32 %v691, %v986
        %v988 = vand.u32 %v987, 4294901760
        %989 = vmatpush.msra.mxu0 %v988
        %v990 = vand.u32 %v690, 4294901760
        %v991 = vsub.f32 %v690, %v990
        %v992 = vand.u32 %v991, 4294901760
        %993 = vmatpush.msra.mxu0 %v992
        %v994 = vand.u32 %v689, 4294901760
        %v995 = vsub.f32 %v689, %v994
        %v996 = vand.u32 %v995, 4294901760
        %997 = vmatpush.msra.mxu0 %v996
        %v998 = vand.u32 %v688, 4294901760
        %v999 = vsub.f32 %v688, %v998
        %v1000 = vand.u32 %v999, 4294901760
        %1001 = vmatpush.msra.mxu0 %v1000
        %v1002 = vand.u32 %v687, 4294901760
        %v1003 = vsub.f32 %v687, %v1002
        %v1004 = vand.u32 %v1003, 4294901760
        %1005 = vmatpush.msra.mxu0 %v1004
        %v1006 = vand.u32 %v686, 4294901760
        %1007 = vmatmul.f32.gmra.mxu0 %v1006
        %v1008 = vpop.f32.mrf.mxu0
        %v1009 = vadd.f32 %v940, %v1008
        %1010 = vdwg.mxu0
        %v1011 = vand.u32 %v702, 4294901760
        %1012 = vmatpush.msra.mxu0 %v1011
        %v1013 = vand.u32 %v701, 4294901760
        %1014 = vmatpush.msra.mxu0 %v1013
        %v1015 = vand.u32 %v700, 4294901760
        %1016 = vmatpush.msra.mxu0 %v1015
        %v1017 = vand.u32 %v699, 4294901760
        %1018 = vmatpush.msra.mxu0 %v1017
        %v1019 = vand.u32 %v698, 4294901760
        %1020 = vmatpush.msra.mxu0 %v1019
        %v1021 = vand.u32 %v697, 4294901760
        %1022 = vmatpush.msra.mxu0 %v1021
        %v1023 = vand.u32 %v696, 4294901760
        %1024 = vmatpush.msra.mxu0 %v1023
        %v1025 = vand.u32 %v695, 4294901760
        %1026 = vmatpush.msra.mxu0 %v1025
        %v1027 = vand.u32 %v694, 4294901760
        %1028 = vmatpush.msra.mxu0 %v1027
        %v1029 = vand.u32 %v693, 4294901760
        %1030 = vmatpush.msra.mxu0 %v1029
        %v1031 = vand.u32 %v692, 4294901760
        %1032 = vmatpush.msra.mxu0 %v1031
        %v1033 = vand.u32 %v691, 4294901760
        %1034 = vmatpush.msra.mxu0 %v1033
        %v1035 = vand.u32 %v690, 4294901760
        %1036 = vmatpush.msra.mxu0 %v1035
        %v1037 = vand.u32 %v689, 4294901760
        %1038 = vmatpush.msra.mxu0 %v1037
        %v1039 = vand.u32 %v688, 4294901760
        %1040 = vmatpush.msra.mxu0 %v1039
        %v1041 = vand.u32 %v687, 4294901760
        %1042 = vmatpush.msra.mxu0 %v1041
        %v1043 = vand.u32 %v686, 4294901760
        %1044 = vmatmul.f32.gmra.mxu0 %v1043
        %v1045 = vpop.f32.mrf.mxu0
        %v1046 = vadd.f32 %v1009, %v1045
        %1047 = vdwg.mxu0
        %v1048 = vmax.f32 %v1046, 0.0
        %v1049 = vld [vmem:[#allocation7] sm:$0xff]
        %v1050 = vld [vmem:[#allocation7 + $0x8] sm:$0xff]
        %v1051 = vld [vmem:[#allocation7 + $0x10] sm:$0xff]
        %v1052 = vld [vmem:[#allocation7 + $0x18] sm:$0xff]
        %v1053 = vld [vmem:[#allocation7 + $0x20] sm:$0xff]
        %v1054 = vld [vmem:[#allocation7 + $0x28] sm:$0xff]
        %v1055 = vld [vmem:[#allocation7 + $0x30] sm:$0xff]
        %v1056 = vld [vmem:[#allocation7 + $0x38] sm:$0xff]
        %v1057 = vld [vmem:[#allocation7 + $0x40] sm:$0xff]
        %v1058 = vld [vmem:[#allocation7 + $0x48] sm:$0xff]
        %v1059 = vld [vmem:[#allocation7 + $0x50] sm:$0xff]
        %v1060 = vld [vmem:[#allocation7 + $0x58] sm:$0xff]
        %v1061 = vld [vmem:[#allocation7 + $0x60] sm:$0xff]
        %v1062 = vld [vmem:[#allocation7 + $0x68] sm:$0xff]
        %v1063 = vld [vmem:[#allocation7 + $0x70] sm:$0xff]
        %v1064 = vld [vmem:[#allocation7 + $0x78] sm:$0xff]
        %v1065 = vld [vmem:[%s6] sm:$0x1]
        %v1067 = vperm.slane %v1065, 0
        %v1069 = vand.u32 %v1064, 4294901760
        %1070 = vmatpush.msra.mxu0 %v1069
        %v1071 = vand.u32 %v1063, 4294901760
        %1072 = vmatpush.msra.mxu0 %v1071
        %v1073 = vand.u32 %v1062, 4294901760
        %1074 = vmatpush.msra.mxu0 %v1073
        %v1075 = vand.u32 %v1061, 4294901760
        %1076 = vmatpush.msra.mxu0 %v1075
        %v1077 = vand.u32 %v1060, 4294901760
        %1078 = vmatpush.msra.mxu0 %v1077
        %v1079 = vand.u32 %v1059, 4294901760
        %1080 = vmatpush.msra.mxu0 %v1079
        %v1081 = vand.u32 %v1058, 4294901760
        %1082 = vmatpush.msra.mxu0 %v1081
        %v1083 = vand.u32 %v1057, 4294901760
        %1084 = vmatpush.msra.mxu0 %v1083
        %v1085 = vand.u32 %v1056, 4294901760
        %1086 = vmatpush.msra.mxu0 %v1085
        %v1087 = vand.u32 %v1055, 4294901760
        %1088 = vmatpush.msra.mxu0 %v1087
        %v1089 = vand.u32 %v1054, 4294901760
        %1090 = vmatpush.msra.mxu0 %v1089
        %v1091 = vand.u32 %v1053, 4294901760
        %1092 = vmatpush.msra.mxu0 %v1091
        %v1093 = vand.u32 %v1052, 4294901760
        %1094 = vmatpush.msra.mxu0 %v1093
        %v1095 = vand.u32 %v1051, 4294901760
        %1096 = vmatpush.msra.mxu0 %v1095
        %v1097 = vand.u32 %v1050, 4294901760
        %1098 = vmatpush.msra.mxu0 %v1097
        %v1099 = vand.u32 %v1049, 4294901760
        %1100 = vmatpush.msra.mxu0 %v1099
        %v1101 = vand.u32 %v1048, 4294901760
        %v1102 = vsub.f32 %v1048, %v1101
        %v1103 = vand.u32 %v1102, 4294901760
        %v1104 = vsub.f32 %v1102, %v1103
        %v1105 = vand.u32 %v1104, 4294901760
        %1106 = vmatmul.f32.gmra.mxu0 %v1105
        %v1107 = vpop.f32.mrf.mxu0
        %v1108 = vadd.f32 %v1067, %v1107
        %1109 = vdwg.mxu0
        %v1110 = vand.u32 %v1064, 4294901760
        %v1111 = vsub.f32 %v1064, %v1110
        %v1112 = vand.u32 %v1111, 4294901760
        %v1113 = vsub.f32 %v1111, %v1112
        %v1114 = vand.u32 %v1113, 4294901760
        %1115 = vmatpush.msra.mxu0 %v1114
        %v1116 = vand.u32 %v1063, 4294901760
        %v1117 = vsub.f32 %v1063, %v1116
        %v1118 = vand.u32 %v1117, 4294901760
        %v1119 = vsub.f32 %v1117, %v1118
        %v1120 = vand.u32 %v1119, 4294901760
        %1121 = vmatpush.msra.mxu0 %v1120
        %v1122 = vand.u32 %v1062, 4294901760
        %v1123 = vsub.f32 %v1062, %v1122
        %v1124 = vand.u32 %v1123, 4294901760
        %v1125 = vsub.f32 %v1123, %v1124
        %v1126 = vand.u32 %v1125, 4294901760
        %1127 = vmatpush.msra.mxu0 %v1126
        %v1128 = vand.u32 %v1061, 4294901760
        %v1129 = vsub.f32 %v1061, %v1128
        %v1130 = vand.u32 %v1129, 4294901760
        %v1131 = vsub.f32 %v1129, %v1130
        %v1132 = vand.u32 %v1131, 4294901760
        %1133 = vmatpush.msra.mxu0 %v1132
        %v1134 = vand.u32 %v1060, 4294901760
        %v1135 = vsub.f32 %v1060, %v1134
        %v1136 = vand.u32 %v1135, 4294901760
        %v1137 = vsub.f32 %v1135, %v1136
        %v1138 = vand.u32 %v1137, 4294901760
        %1139 = vmatpush.msra.mxu0 %v1138
        %v1140 = vand.u32 %v1059, 4294901760
        %v1141 = vsub.f32 %v1059, %v1140
        %v1142 = vand.u32 %v1141, 4294901760
        %v1143 = vsub.f32 %v1141, %v1142
        %v1144 = vand.u32 %v1143, 4294901760
        %1145 = vmatpush.msra.mxu0 %v1144
        %v1146 = vand.u32 %v1058, 4294901760
        %v1147 = vsub.f32 %v1058, %v1146
        %v1148 = vand.u32 %v1147, 4294901760
        %v1149 = vsub.f32 %v1147, %v1148
        %v1150 = vand.u32 %v1149, 4294901760
        %1151 = vmatpush.msra.mxu0 %v1150
        %v1152 = vand.u32 %v1057, 4294901760
        %v1153 = vsub.f32 %v1057, %v1152
        %v1154 = vand.u32 %v1153, 4294901760
        %v1155 = vsub.f32 %v1153, %v1154
        %v1156 = vand.u32 %v1155, 4294901760
        %1157 = vmatpush.msra.mxu0 %v1156
        %v1158 = vand.u32 %v1056, 4294901760
        %v1159 = vsub.f32 %v1056, %v1158
        %v1160 = vand.u32 %v1159, 4294901760
        %v1161 = vsub.f32 %v1159, %v1160
        %v1162 = vand.u32 %v1161, 4294901760
        %1163 = vmatpush.msra.mxu0 %v1162
        %v1164 = vand.u32 %v1055, 4294901760
        %v1165 = vsub.f32 %v1055, %v1164
        %v1166 = vand.u32 %v1165, 4294901760
        %v1167 = vsub.f32 %v1165, %v1166
        %v1168 = vand.u32 %v1167, 4294901760
        %1169 = vmatpush.msra.mxu0 %v1168
        %v1170 = vand.u32 %v1054, 4294901760
        %v1171 = vsub.f32 %v1054, %v1170
        %v1172 = vand.u32 %v1171, 4294901760
        %v1173 = vsub.f32 %v1171, %v1172
        %v1174 = vand.u32 %v1173, 4294901760
        %1175 = vmatpush.msra.mxu0 %v1174
        %v1176 = vand.u32 %v1053, 4294901760
        %v1177 = vsub.f32 %v1053, %v1176
        %v1178 = vand.u32 %v1177, 4294901760
        %v1179 = vsub.f32 %v1177, %v1178
        %v1180 = vand.u32 %v1179, 4294901760
        %1181 = vmatpush.msra.mxu0 %v1180
        %v1182 = vand.u32 %v1052, 4294901760
        %v1183 = vsub.f32 %v1052, %v1182
        %v1184 = vand.u32 %v1183, 4294901760
        %v1185 = vsub.f32 %v1183, %v1184
        %v1186 = vand.u32 %v1185, 4294901760
        %1187 = vmatpush.msra.mxu0 %v1186
        %v1188 = vand.u32 %v1051, 4294901760
        %v1189 = vsub.f32 %v1051, %v1188
        %v1190 = vand.u32 %v1189, 4294901760
        %v1191 = vsub.f32 %v1189, %v1190
        %v1192 = vand.u32 %v1191, 4294901760
        %1193 = vmatpush.msra.mxu0 %v1192
        %v1194 = vand.u32 %v1050, 4294901760
        %v1195 = vsub.f32 %v1050, %v1194
        %v1196 = vand.u32 %v1195, 4294901760
        %v1197 = vsub.f32 %v1195, %v1196
        %v1198 = vand.u32 %v1197, 4294901760
        %1199 = vmatpush.msra.mxu0 %v1198
        %v1200 = vand.u32 %v1049, 4294901760
        %v1201 = vsub.f32 %v1049, %v1200
        %v1202 = vand.u32 %v1201, 4294901760
        %v1203 = vsub.f32 %v1201, %v1202
        %v1204 = vand.u32 %v1203, 4294901760
        %1205 = vmatpush.msra.mxu0 %v1204
        %v1206 = vand.u32 %v1048, 4294901760
        %1207 = vmatmul.f32.gmra.mxu0 %v1206
        %v1208 = vpop.f32.mrf.mxu0
        %v1209 = vadd.f32 %v1108, %v1208
        %1210 = vdwg.mxu0
        %v1211 = vand.u32 %v1064, 4294901760
        %v1212 = vsub.f32 %v1064, %v1211
        %1213 = vmatpush.msra.mxu0 %v1212
        %v1214 = vand.u32 %v1063, 4294901760
        %v1215 = vsub.f32 %v1063, %v1214
        %1216 = vmatpush.msra.mxu0 %v1215
        %v1217 = vand.u32 %v1062, 4294901760
        %v1218 = vsub.f32 %v1062, %v1217
        %1219 = vmatpush.msra.mxu0 %v1218
        %v1220 = vand.u32 %v1061, 4294901760
        %v1221 = vsub.f32 %v1061, %v1220
        %1222 = vmatpush.msra.mxu0 %v1221
        %v1223 = vand.u32 %v1060, 4294901760
        %v1224 = vsub.f32 %v1060, %v1223
        %1225 = vmatpush.msra.mxu0 %v1224
        %v1226 = vand.u32 %v1059, 4294901760
        %v1227 = vsub.f32 %v1059, %v1226
        %1228 = vmatpush.msra.mxu0 %v1227
        %v1229 = vand.u32 %v1058, 4294901760
        %v1230 = vsub.f32 %v1058, %v1229
        %1231 = vmatpush.msra.mxu0 %v1230
        %v1232 = vand.u32 %v1057, 4294901760
        %v1233 = vsub.f32 %v1057, %v1232
        %1234 = vmatpush.msra.mxu0 %v1233
        %v1235 = vand.u32 %v1056, 4294901760
        %v1236 = vsub.f32 %v1056, %v1235
        %1237 = vmatpush.msra.mxu0 %v1236
        %v1238 = vand.u32 %v1055, 4294901760
        %v1239 = vsub.f32 %v1055, %v1238
        %1240 = vmatpush.msra.mxu0 %v1239
        %v1241 = vand.u32 %v1054, 4294901760
        %v1242 = vsub.f32 %v1054, %v1241
        %1243 = vmatpush.msra.mxu0 %v1242
        %v1244 = vand.u32 %v1053, 4294901760
        %v1245 = vsub.f32 %v1053, %v1244
        %1246 = vmatpush.msra.mxu0 %v1245
        %v1247 = vand.u32 %v1052, 4294901760
        %v1248 = vsub.f32 %v1052, %v1247
        %1249 = vmatpush.msra.mxu0 %v1248
        %v1250 = vand.u32 %v1051, 4294901760
        %v1251 = vsub.f32 %v1051, %v1250
        %1252 = vmatpush.msra.mxu0 %v1251
        %v1253 = vand.u32 %v1050, 4294901760
        %v1254 = vsub.f32 %v1050, %v1253
        %1255 = vmatpush.msra.mxu0 %v1254
        %v1256 = vand.u32 %v1049, 4294901760
        %v1257 = vsub.f32 %v1049, %v1256
        %1258 = vmatpush.msra.mxu0 %v1257
        %v1259 = vand.u32 %v1048, 4294901760
        %v1260 = vsub.f32 %v1048, %v1259
        %1261 = vmatmul.f32.gmra.mxu0 %v1260
        %v1262 = vpop.f32.mrf.mxu0
        %v1263 = vadd.f32 %v1209, %v1262
        %1264 = vdwg.mxu0
        %v1265 = vand.u32 %v1064, 4294901760
        %1266 = vmatpush.msra.mxu0 %v1265
        %v1267 = vand.u32 %v1063, 4294901760
        %1268 = vmatpush.msra.mxu0 %v1267
        %v1269 = vand.u32 %v1062, 4294901760
        %1270 = vmatpush.msra.mxu0 %v1269
        %v1271 = vand.u32 %v1061, 4294901760
        %1272 = vmatpush.msra.mxu0 %v1271
        %v1273 = vand.u32 %v1060, 4294901760
        %1274 = vmatpush.msra.mxu0 %v1273
        %v1275 = vand.u32 %v1059, 4294901760
        %1276 = vmatpush.msra.mxu0 %v1275
        %v1277 = vand.u32 %v1058, 4294901760
        %1278 = vmatpush.msra.mxu0 %v1277
        %v1279 = vand.u32 %v1057, 4294901760
        %1280 = vmatpush.msra.mxu0 %v1279
        %v1281 = vand.u32 %v1056, 4294901760
        %1282 = vmatpush.msra.mxu0 %v1281
        %v1283 = vand.u32 %v1055, 4294901760
        %1284 = vmatpush.msra.mxu0 %v1283
        %v1285 = vand.u32 %v1054, 4294901760
        %1286 = vmatpush.msra.mxu0 %v1285
        %v1287 = vand.u32 %v1053, 4294901760
        %1288 = vmatpush.msra.mxu0 %v1287
        %v1289 = vand.u32 %v1052, 4294901760
        %1290 = vmatpush.msra.mxu0 %v1289
        %v1291 = vand.u32 %v1051, 4294901760
        %1292 = vmatpush.msra.mxu0 %v1291
        %v1293 = vand.u32 %v1050, 4294901760
        %1294 = vmatpush.msra.mxu0 %v1293
        %v1295 = vand.u32 %v1049, 4294901760
        %1296 = vmatpush.msra.mxu0 %v1295
        %v1297 = vand.u32 %v1048, 4294901760
        %v1298 = vsub.f32 %v1048, %v1297
        %v1299 = vand.u32 %v1298, 4294901760
        %1300 = vmatmul.f32.gmra.mxu0 %v1299
        %v1301 = vpop.f32.mrf.mxu0
        %v1302 = vadd.f32 %v1263, %v1301
        %1303 = vdwg.mxu0
        %v1304 = vand.u32 %v1064, 4294901760
        %v1305 = vsub.f32 %v1064, %v1304
        %v1306 = vand.u32 %v1305, 4294901760
        %1307 = vmatpush.msra.mxu0 %v1306
        %v1308 = vand.u32 %v1063, 4294901760
        %v1309 = vsub.f32 %v1063, %v1308
        %v1310 = vand.u32 %v1309, 4294901760
        %1311 = vmatpush.msra.mxu0 %v1310
        %v1312 = vand.u32 %v1062, 4294901760
        %v1313 = vsub.f32 %v1062, %v1312
        %v1314 = vand.u32 %v1313, 4294901760
        %1315 = vmatpush.msra.mxu0 %v1314
        %v1316 = vand.u32 %v1061, 4294901760
        %v1317 = vsub.f32 %v1061, %v1316
        %v1318 = vand.u32 %v1317, 4294901760
        %1319 = vmatpush.msra.mxu0 %v1318
        %v1320 = vand.u32 %v1060, 4294901760
        %v1321 = vsub.f32 %v1060, %v1320
        %v1322 = vand.u32 %v1321, 4294901760
        %1323 = vmatpush.msra.mxu0 %v1322
        %v1324 = vand.u32 %v1059, 4294901760
        %v1325 = vsub.f32 %v1059, %v1324
        %v1326 = vand.u32 %v1325, 4294901760
        %1327 = vmatpush.msra.mxu0 %v1326
        %v1328 = vand.u32 %v1058, 4294901760
        %v1329 = vsub.f32 %v1058, %v1328
        %v1330 = vand.u32 %v1329, 4294901760
        %1331 = vmatpush.msra.mxu0 %v1330
        %v1332 = vand.u32 %v1057, 4294901760
        %v1333 = vsub.f32 %v1057, %v1332
        %v1334 = vand.u32 %v1333, 4294901760
        %1335 = vmatpush.msra.mxu0 %v1334
        %v1336 = vand.u32 %v1056, 4294901760
        %v1337 = vsub.f32 %v1056, %v1336
        %v1338 = vand.u32 %v1337, 4294901760
        %1339 = vmatpush.msra.mxu0 %v1338
        %v1340 = vand.u32 %v1055, 4294901760
        %v1341 = vsub.f32 %v1055, %v1340
        %v1342 = vand.u32 %v1341, 4294901760
        %1343 = vmatpush.msra.mxu0 %v1342
        %v1344 = vand.u32 %v1054, 4294901760
        %v1345 = vsub.f32 %v1054, %v1344
        %v1346 = vand.u32 %v1345, 4294901760
        %1347 = vmatpush.msra.mxu0 %v1346
        %v1348 = vand.u32 %v1053, 4294901760
        %v1349 = vsub.f32 %v1053, %v1348
        %v1350 = vand.u32 %v1349, 4294901760
        %1351 = vmatpush.msra.mxu0 %v1350
        %v1352 = vand.u32 %v1052, 4294901760
        %v1353 = vsub.f32 %v1052, %v1352
        %v1354 = vand.u32 %v1353, 4294901760
        %1355 = vmatpush.msra.mxu0 %v1354
        %v1356 = vand.u32 %v1051, 4294901760
        %v1357 = vsub.f32 %v1051, %v1356
        %v1358 = vand.u32 %v1357, 4294901760
        %1359 = vmatpush.msra.mxu0 %v1358
        %v1360 = vand.u32 %v1050, 4294901760
        %v1361 = vsub.f32 %v1050, %v1360
        %v1362 = vand.u32 %v1361, 4294901760
        %1363 = vmatpush.msra.mxu0 %v1362
        %v1364 = vand.u32 %v1049, 4294901760
        %v1365 = vsub.f32 %v1049, %v1364
        %v1366 = vand.u32 %v1365, 4294901760
        %1367 = vmatpush.msra.mxu0 %v1366
        %v1368 = vand.u32 %v1048, 4294901760
        %1369 = vmatmul.f32.gmra.mxu0 %v1368
        %v1370 = vpop.f32.mrf.mxu0
        %v1371 = vadd.f32 %v1302, %v1370
        %1372 = vdwg.mxu0
        %v1373 = vand.u32 %v1064, 4294901760
        %1374 = vmatpush.msra.mxu0 %v1373
        %v1375 = vand.u32 %v1063, 4294901760
        %1376 = vmatpush.msra.mxu0 %v1375
        %v1377 = vand.u32 %v1062, 4294901760
        %1378 = vmatpush.msra.mxu0 %v1377
        %v1379 = vand.u32 %v1061, 4294901760
        %1380 = vmatpush.msra.mxu0 %v1379
        %v1381 = vand.u32 %v1060, 4294901760
        %1382 = vmatpush.msra.mxu0 %v1381
        %v1383 = vand.u32 %v1059, 4294901760
        %1384 = vmatpush.msra.mxu0 %v1383
        %v1385 = vand.u32 %v1058, 4294901760
        %1386 = vmatpush.msra.mxu0 %v1385
        %v1387 = vand.u32 %v1057, 4294901760
        %1388 = vmatpush.msra.mxu0 %v1387
        %v1389 = vand.u32 %v1056, 4294901760
        %1390 = vmatpush.msra.mxu0 %v1389
        %v1391 = vand.u32 %v1055, 4294901760
        %1392 = vmatpush.msra.mxu0 %v1391
        %v1393 = vand.u32 %v1054, 4294901760
        %1394 = vmatpush.msra.mxu0 %v1393
        %v1395 = vand.u32 %v1053, 4294901760
        %1396 = vmatpush.msra.mxu0 %v1395
        %v1397 = vand.u32 %v1052, 4294901760
        %1398 = vmatpush.msra.mxu0 %v1397
        %v1399 = vand.u32 %v1051, 4294901760
        %1400 = vmatpush.msra.mxu0 %v1399
        %v1401 = vand.u32 %v1050, 4294901760
        %1402 = vmatpush.msra.mxu0 %v1401
        %v1403 = vand.u32 %v1049, 4294901760
        %1404 = vmatpush.msra.mxu0 %v1403
        %v1405 = vand.u32 %v1048, 4294901760
        %1406 = vmatmul.f32.gmra.mxu0 %v1405
        %v1407 = vpop.f32.mrf.mxu0
        %v1408 = vadd.f32 %v1371, %v1407
        %1409 = vdwg.mxu0
        %1410 = vst [vmem:[%s319] sm:$0xff] %v1408
        %s1411 = sand.u32 %s183, 1
        %s1412 = scalar_lea.sflag [#allocation4], %s1411
        %s1413 = sand.u32 %s183, 1
        %s1414 = smul.addr %s1413, 8
        %s1415 = scalar_lea.vmem [#allocation8], %s1414
        // Predicated region
        $region61: #{_ffn_forward.1} parent=47 // pred_check
          %p1416 = pneg %p193
        $region62: #{_ffn_forward.1} parent=47 // pred_check_branch
          %1418 = sbr.rel (%p1416) target = $region64
        $region63: #{_ffn_forward.1} parent=47 // pred_region
          %1420 = vsyncadd %s1412, 0
          %s1421 = smul.addr %s23, 8
          %s1422 = scalar_lea.hbm %s7, %s1421
          %s1424 = sshll.u32 %s1415, 4
          %s1425 = int_to_ptr.vmem [resolvable:$true] %s1424
          %s1426 = sshll.u32 %s1422, 4
          %s1427 = int_to_ptr.hbm [resolvable:$true] %s1426
          %1429 = dma.vmem_to_hbm [thread:$0]  %s1425, 128, %s1427, %s1412
        $region64: #{_ffn_forward.1} parent=47 // pred_fallthru
          _
      $region48: #{_ffn_forward.1} parent=5 // pred_fallthru
        _
      %p1430 = scmp.le.s32.totalorder 2, %s18
      // Predicated region
      $region65: #{_ffn_forward.1} parent=5 // pred_check
        %p1431 = pneg %p1430
      $region66: #{_ffn_forward.1} parent=5 // pred_check_branch
        %1433 = sbr.rel (%p1431) target = $region68
      $region67: #{_ffn_forward.1} parent=5 // pred_region
        %s1434 = ssub.s32 %s18, 2
        // Predicated region
        $region69: #{_ffn_forward.1} parent=67 // pred_check
          %p1435 = pneg %p199
        $region70: #{_ffn_forward.1} parent=67 // pred_check_branch
          %1437 = sbr.rel (%p1435) target = $region72
        $region71: #{_ffn_forward.1} parent=67 // pred_region
          %s1438 = sand.u32 %s184, 1
          %s1439 = scalar_lea.sflag [#allocation4], %s1438
          %s1440 = sand.u32 %s184, 1
          %s1441 = smul.addr %s1440, 8
          %s1442 = scalar_lea.vmem [#allocation8], %s1441
          %1444 = dma.done %s1439, 128
        $region72: #{_ffn_forward.1} parent=67 // pred_fallthru
          _
      $region68: #{_ffn_forward.1} parent=5 // pred_fallthru
        _
    $region6: #{_ffn_forward.1} parent=1 // loop_footer
      %s22 = sadd.s32 1, %s18
    $region7: #{_ffn_forward.1} parent=1 // loop_footer_branch
      %17 = sbr.rel target = $region3
    $region8: #{_ffn_forward.1} parent=1 // loop_exit
      _
    %1445 = vsyncpa [#allocation3], 1
    %s1446 = scalar_lea.sflag [#allocation3], 1
    %1447 = vsyncpa %s1446, 1
    %1448 = vsyncpa [#allocation6], 1
    %1449 = vsyncpa [#allocation4], 1
    %s1450 = scalar_lea.sflag [#allocation4], 1
    %1451 = vsyncpa %s1450, 1

// kernel: _ffn_forward.1
$region0: #{_ffn_forward.1}
  #allocation0 [shape = 'u32[]', space=smem, size = 0x4, offset = 0x4, fixed_abs, tag = 'smem constant byte address 0x4 - core index']
  #allocation1 [shape = 'u32[72,128]{1,0:T(1,128)}', space=vmem, size = 0x9000, scoped, tag = 'internal scratch']
  %s0 = inlined_call_operand.vmem [shape: f32[16,128], index: 0, kind: input, shape index: {}]
  %s1 = inlined_call_operand.hbm [shape: f32[128,128], index: 1, kind: input, shape index: {}]
  %s2 = inlined_call_operand.vmem [shape: f32[1,128], index: 2, kind: input, shape index: {}]
  %s3 = inlined_call_operand.hbm [shape: f32[128,128], index: 3, kind: input, shape index: {}]
  %s4 = inlined_call_operand.vmem [shape: f32[1,128], index: 4, kind: input, shape index: {}]
  %s5 = inlined_call_operand.hbm [shape: f32[128,128], index: 5, kind: input, shape index: {}]
  %s6 = inlined_call_operand.vmem [shape: f32[1,128], index: 6, kind: input, shape index: {}]
  %s7 = inlined_call_operand.hbm [shape: f32[16,128], index: 7, kind: output, shape index: {}]
  %s8 = sld [smem:[#allocation0]]
  $region73: #{_ffn_forward.1} parent=0
    _
  %s10 = ssub.s32 1, %s8
  %s11 = scalar_select 0, %s10, %s8
  $region1: #{_ffn_forward.1} parent=0
    #allocation2 [shape = 'u8[65536]{0}', space=vmem, size = 0x10000, scoped, tag = 'input window, operand 1, single buffered']
    #allocation3 [shape = 's32[2]{0}', space=sflag, size = 0x8, scoped, tag = 'scoped memory for _ffn_forward.1']
    #allocation4 [shape = 's32[2]{0}', space=sflag, size = 0x8, scoped, tag = 'scoped memory for _ffn_forward.1']
    #allocation5 [shape = 'u8[65536]{0}', space=vmem, size = 0x10000, scoped, tag = 'input window, operand 3, single buffered']
    #allocation6 [shape = 's32[1]{0}', space=sflag, size = 0x4, scoped, tag = 'scoped memory for _ffn_forward.1']
    #allocation7 [shape = 'u8[65536]{0}', space=vmem, size = 0x10000, scoped, tag = 'input window, operand 5, single buffered']
    #allocation8 [shape = 'u8[8192]{0}', space=vmem, size = 0x2000, scoped, tag = 'output window, operand 0']
    %12 = vsyncpa [#allocation3], 0
    %13 = vsyncpa [#allocation6], 0
    %14 = vsyncpa [#allocation4], 0
    %s15 = scalar_lea.sflag [#allocation4], 1
    %16 = vsyncpa %s15, 0
    loop: start=0, step=1, limit=4
    $region2: #{_ffn_forward.1} parent=1 // loop_pre_header
      _
    $region3: #{_ffn_forward.1} parent=1 // loop_header
      %s18 = sphi 0, %s22
      %p19 = scmp.ge.s32.totalorder %s18, 4
      %s28 = sphi 0, %s30
      %s31 = sphi 0, %s28
      %s32 = sphi 0, %s31
      %s48 = sphi 0, %s32
      %s52 = sphi 0, %s52
      %s54 = sphi 0, %s52
      %s55 = sphi 0, %s54
      %s69 = sphi 0, %s55
      %s73 = sphi 0, %s73
      %s75 = sphi 0, %s73
      %s76 = sphi 0, %s75
      %s90 = sphi 0, %s76
      %s94 = sphi 0, %s94
      %s96 = sphi 0, %s94
      %s97 = sphi 0, %s96
      %s111 = sphi 0, %s97
      %s115 = sphi 0, %s115
      %s117 = sphi 0, %s115
      %s118 = sphi 0, %s117
      %s132 = sphi 0, %s118
      %s136 = sphi 0, %s136
      %s138 = sphi 0, %s136
      %s139 = sphi 0, %s138
      %s153 = sphi 0, %s139
      %s157 = sphi 0, %s157
      %s159 = sphi 0, %s157
      %s160 = sphi 0, %s159
      %s174 = sphi 0, %s160
      %s180 = sphi 0, %s182
      %s183 = sphi 0, %s180
      %s184 = sphi 0, %s183
      %s200 = sphi 0, %s184
    $region4: #{_ffn_forward.1} parent=1 // loop_header_branch
      %21 = sbr.rel (%p19) target = $region8
    $region5: #{_ffn_forward.1} parent=1 // loop_body
      %s23 = ssub.s32 %s18, 1
      %s24 = ssub.s32 %s18, 2
      %s25 = sadd.s32 %s18, 1
      %s26 = ssub.s32 %s18, %s25
      %p27 = scmp.eq.s32.totalorder %s26, 0
      %s29 = sadd.s32 %s28, 1
      %s30 = scalar_select %p27, %s28, %s29
      %p33 = pneg %p27
      %p34 = scmp.eq.s32.totalorder %s18, 1
      %p35 = por %p33, %p34
      %p36 = scmp.ne.s32.totalorder %s28, %s31
      %p37 = scmp.eq.s32.totalorder %s18, 0
      %p38 = por %p36, %p37
      %p39 = scmp.ne.s32.totalorder %s28, %s31
      %p40 = scmp.eq.s32.totalorder %s23, 1
      %p41 = por %p39, %p40
      %p42 = scmp.ne.s32.totalorder %s31, %s32
      %p43 = scmp.eq.s32.totalorder %s23, 0
      %p44 = por %p42, %p43
      %p45 = scmp.ne.s32.totalorder %s31, %s32
      %p46 = scmp.eq.s32.totalorder %s24, 1
      %p47 = por %p45, %p46
      %p49 = scmp.ne.s32.totalorder %s32, %s48
      %p50 = scmp.eq.s32.totalorder %s24, 0
      %p51 = por %p49, %p50
      %s53 = sadd.s32 %s52, 1
      %p56 = scmp.eq.s32.totalorder %s18, 1
      %p57 = scmp.ne.s32.totalorder %s52, %s54
      %p58 = scmp.eq.s32.totalorder %s18, 0
      %p59 = por %p57, %p58
      %p60 = scmp.ne.s32.totalorder %s52, %s54
      %p61 = scmp.eq.s32.totalorder %s23, 1
      %p62 = por %p60, %p61
      %p63 = scmp.ne.s32.totalorder %s54, %s55
      %p64 = scmp.eq.s32.totalorder %s23, 0
      %p65 = por %p63, %p64
      %p66 = scmp.ne.s32.totalorder %s54, %s55
      %p67 = scmp.eq.s32.totalorder %s24, 1
      %p68 = por %p66, %p67
      %p70 = scmp.ne.s32.totalorder %s55, %s69
      %p71 = scmp.eq.s32.totalorder %s24, 0
      %p72 = por %p70, %p71
      %s74 = sadd.s32 %s73, 1
      %p77 = scmp.eq.s32.totalorder %s18, 1
      %p78 = scmp.ne.s32.totalorder %s73, %s75
      %p79 = scmp.eq.s32.totalorder %s18, 0
      %p80 = por %p78, %p79
      %p81 = scmp.ne.s32.totalorder %s73, %s75
      %p82 = scmp.eq.s32.totalorder %s23, 1
      %p83 = por %p81, %p82
      %p84 = scmp.ne.s32.totalorder %s75, %s76
      %p85 = scmp.eq.s32.totalorder %s23, 0
      %p86 = por %p84, %p85
      %p87 = scmp.ne.s32.totalorder %s75, %s76
      %p88 = scmp.eq.s32.totalorder %s24, 1
      %p89 = por %p87, %p88
      %p91 = scmp.ne.s32.totalorder %s76, %s90
      %p92 = scmp.eq.s32.totalorder %s24, 0
      %p93 = por %p91, %p92
      %s95 = sadd.s32 %s94, 1
      %p98 = scmp.eq.s32.totalorder %s18, 1
      %p99 = scmp.ne.s32.totalorder %s94, %s96
      %p100 = scmp.eq.s32.totalorder %s18, 0
      %p101 = por %p99, %p100
      %p102 = scmp.ne.s32.totalorder %s94, %s96
      %p103 = scmp.eq.s32.totalorder %s23, 1
      %p104 = por %p102, %p103
      %p105 = scmp.ne.s32.totalorder %s96, %s97
      %p106 = scmp.eq.s32.totalorder %s23, 0
      %p107 = por %p105, %p106
      %p108 = scmp.ne.s32.totalorder %s96, %s97
      %p109 = scmp.eq.s32.totalorder %s24, 1
      %p110 = por %p108, %p109
      %p112 = scmp.ne.s32.totalorder %s97, %s111
      %p113 = scmp.eq.s32.totalorder %s24, 0
      %p114 = por %p112, %p113
      %s116 = sadd.s32 %s115, 1
      %p119 = scmp.eq.s32.totalorder %s18, 1
      %p120 = scmp.ne.s32.totalorder %s115, %s117
      %p121 = scmp.eq.s32.totalorder %s18, 0
      %p122 = por %p120, %p121
      %p123 = scmp.ne.s32.totalorder %s115, %s117
      %p124 = scmp.eq.s32.totalorder %s23, 1
      %p125 = por %p123, %p124
      %p126 = scmp.ne.s32.totalorder %s117, %s118
      %p127 = scmp.eq.s32.totalorder %s23, 0
      %p128 = por %p126, %p127
      %p129 = scmp.ne.s32.totalorder %s117, %s118
      %p130 = scmp.eq.s32.totalorder %s24, 1
      %p131 = por %p129, %p130
      %p133 = scmp.ne.s32.totalorder %s118, %s132
      %p134 = scmp.eq.s32.totalorder %s24, 0
      %p135 = por %p133, %p134
      %s137 = sadd.s32 %s136, 1
      %p140 = scmp.eq.s32.totalorder %s18, 1
      %p141 = scmp.ne.s32.totalorder %s136, %s138
      %p142 = scmp.eq.s32.totalorder %s18, 0
      %p143 = por %p141, %p142
      %p144 = scmp.ne.s32.totalorder %s136, %s138
      %p145 = scmp.eq.s32.totalorder %s23, 1
      %p146 = por %p144, %p145
      %p147 = scmp.ne.s32.totalorder %s138, %s139
      %p148 = scmp.eq.s32.totalorder %s23, 0
      %p149 = por %p147, %p148
      %p150 = scmp.ne.s32.totalorder %s138, %s139
      %p151 = scmp.eq.s32.totalorder %s24, 1
      %p152 = por %p150, %p151
      %p154 = scmp.ne.s32.totalorder %s139, %s153
      %p155 = scmp.eq.s32.totalorder %s24, 0
      %p156 = por %p154, %p155
      %s158 = sadd.s32 %s157, 1
      %p161 = scmp.eq.s32.totalorder %s18, 1
      %p162 = scmp.ne.s32.totalorder %s157, %s159
      %p163 = scmp.eq.s32.totalorder %s18, 0
      %p164 = por %p162, %p163
      %p165 = scmp.ne.s32.totalorder %s157, %s159
      %p166 = scmp.eq.s32.totalorder %s23, 1
      %p167 = por %p165, %p166
      %p168 = scmp.ne.s32.totalorder %s159, %s160
      %p169 = scmp.eq.s32.totalorder %s23, 0
      %p170 = por %p168, %p169
      %p171 = scmp.ne.s32.totalorder %s159, %s160
      %p172 = scmp.eq.s32.totalorder %s24, 1
      %p173 = por %p171, %p172
      %p175 = scmp.ne.s32.totalorder %s160, %s174
      %p176 = scmp.eq.s32.totalorder %s24, 0
      %p177 = por %p175, %p176
      %s178 = ssub.s32 %s18, %s25
      %p179 = scmp.eq.s32.totalorder %s178, 0
      %s181 = sadd.s32 %s180, 1
      %s182 = scalar_select %p179, %s180, %s181
      %p185 = pneg %p179
      %p186 = scmp.eq.s32.totalorder %s18, 1
      %p187 = por %p185, %p186
      %p188 = scmp.ne.s32.totalorder %s180, %s183
      %p189 = scmp.eq.s32.totalorder %s18, 0
      %p190 = por %p188, %p189
      %p191 = scmp.ne.s32.totalorder %s180, %s183
      %p192 = scmp.eq.s32.totalorder %s23, 1
      %p193 = por %p191, %p192
      %p194 = scmp.ne.s32.totalorder %s183, %s184
      %p195 = scmp.eq.s32.totalorder %s23, 0
      %p196 = por %p194, %p195
      %p197 = scmp.ne.s32.totalorder %s183, %s184
      %p198 = scmp.eq.s32.totalorder %s24, 1
      %p199 = por %p197, %p198
      %p201 = scmp.ne.s32.totalorder %s184, %s200
      %p202 = scmp.eq.s32.totalorder %s24, 0
      %p203 = por %p201, %p202
      %p204 = scmp.le.s32.totalorder 1, %s18
      %p205 = scmp.lt.s32.totalorder %s18, 3
      %p206 = pnand %p204, %p205
      %p207 = pneg %p206
      // Predicated region
      $region9: #{_ffn_forward.1} parent=5 // pred_check
        _
      $region10: #{_ffn_forward.1} parent=5 // pred_check_branch
        %209 = sbr.rel (%p206) target = $region12
      $region11: #{_ffn_forward.1} parent=5 // pred_region
        %s210 = ssub.s32 %s18, 1
        // Predicated region
        $region13: #{_ffn_forward.1} parent=11 // pred_check
          %p211 = pneg %p65
        $region14: #{_ffn_forward.1} parent=11 // pred_check_branch
          %213 = sbr.rel (%p211) target = $region16
        $region15: #{_ffn_forward.1} parent=11 // pred_region
          %215 = vsyncadd [#allocation3], 0
          %s216 = sshll.u32 %s1, 4
          %s217 = int_to_ptr.hbm [resolvable:$true] %s216
          %s218 = sshll.u32 [#allocation2], 4
          %s219 = int_to_ptr.vmem [resolvable:$true] %s218
          %224 = dma.hbm_to_vmem [thread:$0]  %s217, 2048, %s219, [#allocation3], 128, 128, 8
        $region16: #{_ffn_forward.1} parent=11 // pred_fallthru
          _
        // Predicated region
        $region17: #{_ffn_forward.1} parent=11 // pred_check
          %p225 = pneg %p86
        $region18: #{_ffn_forward.1} parent=11 // pred_check_branch
          %227 = sbr.rel (%p225) target = $region20
        $region19: #{_ffn_forward.1} parent=11 // pred_region
          _
        $region20: #{_ffn_forward.1} parent=11 // pred_fallthru
          _
        // Predicated region
        $region21: #{_ffn_forward.1} parent=11 // pred_check
          %p228 = pneg %p107
        $region22: #{_ffn_forward.1} parent=11 // pred_check_branch
          %230 = sbr.rel (%p228) target = $region24
        $region23: #{_ffn_forward.1} parent=11 // pred_region
          %232 = vsyncadd [#allocation6], 0
          %s233 = sshll.u32 %s3, 4
          %s234 = int_to_ptr.hbm [resolvable:$true] %s233
          %s235 = sshll.u32 [#allocation5], 4
          %s236 = int_to_ptr.vmem [resolvable:$true] %s235
          %241 = dma.hbm_to_vmem [thread:$0]  %s234, 2048, %s236, [#allocation6], 128, 128, 8
        $region24: #{_ffn_forward.1} parent=11 // pred_fallthru
          _
        // Predicated region
        $region25: #{_ffn_forward.1} parent=11 // pred_check
          %p242 = pneg %p128
        $region26: #{_ffn_forward.1} parent=11 // pred_check_branch
          %244 = sbr.rel (%p242) target = $region28
        $region27: #{_ffn_forward.1} parent=11 // pred_region
          _
        $region28: #{_ffn_forward.1} parent=11 // pred_fallthru
          _
        // Predicated region
        $region29: #{_ffn_forward.1} parent=11 // pred_check
          %p245 = pneg %p149
        $region30: #{_ffn_forward.1} parent=11 // pred_check_branch
          %247 = sbr.rel (%p245) target = $region32
        $region31: #{_ffn_forward.1} parent=11 // pred_region
          %249 = vsyncadd [#allocation6], 0
          %s250 = sshll.u32 %s5, 4
          %s251 = int_to_ptr.hbm [resolvable:$true] %s250
          %s252 = sshll.u32 [#allocation7], 4
          %s253 = int_to_ptr.vmem [resolvable:$true] %s252
          %258 = dma.hbm_to_vmem [thread:$0]  %s251, 2048, %s253, [#allocation6], 128, 128, 8
        $region32: #{_ffn_forward.1} parent=11 // pred_fallthru
          _
        // Predicated region
        $region33: #{_ffn_forward.1} parent=11 // pred_check
          %p259 = pneg %p170
        $region34: #{_ffn_forward.1} parent=11 // pred_check_branch
          %261 = sbr.rel (%p259) target = $region36
        $region35: #{_ffn_forward.1} parent=11 // pred_region
          _
        $region36: #{_ffn_forward.1} parent=11 // pred_fallthru
          _
      $region12: #{_ffn_forward.1} parent=5 // pred_fallthru
        _
      %p262 = scmp.lt.s32.totalorder %s18, 2
      // Predicated region
      $region37: #{_ffn_forward.1} parent=5 // pred_check
        %p263 = pneg %p262
      $region38: #{_ffn_forward.1} parent=5 // pred_check_branch
        %265 = sbr.rel (%p263) target = $region40
      $region39: #{_ffn_forward.1} parent=5 // pred_region
        // Predicated region
        $region41: #{_ffn_forward.1} parent=39 // pred_check
          %p266 = pneg %p38
        $region42: #{_ffn_forward.1} parent=39 // pred_check_branch
          %268 = sbr.rel (%p266) target = $region44
        $region43: #{_ffn_forward.1} parent=39 // pred_region
          %p269 = scmp.lt.s32.totalorder %s18, 1
          %s270 = scalar_select %p269, %s18, 1
          %s271 = smul.addr %s270, 8
          %s272 = scalar_lea.vmem %s0, %s271
        $region44: #{_ffn_forward.1} parent=39 // pred_fallthru
          _
      $region40: #{_ffn_forward.1} parent=5 // pred_fallthru
        _
      %p273 = scmp.le.s32.totalorder 1, %s18
      %p274 = scmp.lt.s32.totalorder %s18, 3
      %p275 = pnand %p273, %p274
      %p276 = pneg %p275
      // Predicated region
      $region45: #{_ffn_forward.1} parent=5 // pred_check
        _
      $region46: #{_ffn_forward.1} parent=5 // pred_check_branch
        %278 = sbr.rel (%p275) target = $region48
      $region47: #{_ffn_forward.1} parent=5 // pred_region
        %s279 = ssub.s32 %s18, 1
        // Predicated region
        $region49: #{_ffn_forward.1} parent=47 // pred_check
          %p280 = pneg %p65
        $region50: #{_ffn_forward.1} parent=47 // pred_check_branch
          %282 = sbr.rel (%p280) target = $region52
        $region51: #{_ffn_forward.1} parent=47 // pred_region
          %284 = dma.done [#allocation3], 2048
        $region52: #{_ffn_forward.1} parent=47 // pred_fallthru
          _
        // Predicated region
        $region53: #{_ffn_forward.1} parent=47 // pred_check
          %p285 = pneg %p107
        $region54: #{_ffn_forward.1} parent=47 // pred_check_branch
          %287 = sbr.rel (%p285) target = $region56
        $region55: #{_ffn_forward.1} parent=47 // pred_region
          %289 = dma.done [#allocation6], 2048
        $region56: #{_ffn_forward.1} parent=47 // pred_fallthru
          _
        // Predicated region
        $region57: #{_ffn_forward.1} parent=47 // pred_check
          %p290 = pneg %p149
        $region58: #{_ffn_forward.1} parent=47 // pred_check_branch
          %292 = sbr.rel (%p290) target = $region60
        $region59: #{_ffn_forward.1} parent=47 // pred_region
          %294 = dma.done [#allocation6], 2048
        $region60: #{_ffn_forward.1} parent=47 // pred_fallthru
          _
        %p295 = scmp.lt.s32.totalorder %s23, 1
        %s296 = scalar_select %p295, %s23, 1
        %s297 = smul.addr %s296, 8
        %s298 = scalar_lea.vmem %s0, %s297
        %p299 = pneg %p44
        %p300 = pneg %p41
        %p301 = pneg %p65
        %p302 = pneg %p62
        %p303 = pneg %p86
        %p304 = pneg %p83
        %p305 = pneg %p107
        %p306 = pneg %p104
        %p307 = pneg %p128
        %p308 = pneg %p125
        %p309 = pneg %p149
        %p310 = pneg %p146
        %p311 = pneg %p170
        %p312 = pneg %p167
        %p313 = pneg %p196
        %p314 = pneg %p193
        %s315 = sand.u32 %s183, 1
        %s316 = scalar_lea.sflag [#allocation4], %s315
        %s317 = sand.u32 %s183, 1
        %s318 = smul.addr %s317, 8
        %s319 = scalar_lea.vmem [#allocation8], %s318
        %p320 = scmp.lt.s32.totalorder %s23, 1
        %s321 = scalar_select %p320, %s23, 1
        %s322 = smul.addr %s321, 8
        %s323 = scalar_lea.vmem %s0, %s322
        %v324 = vld [vmem:[%s323] sm:$0xff]
        %v325 = vld [vmem:[#allocation2] sm:$0xff]
        %v326 = vld [vmem:[#allocation2 + $0x8] sm:$0xff]
        %v327 = vld [vmem:[#allocation2 + $0x10] sm:$0xff]
        %v328 = vld [vmem:[#allocation2 + $0x18] sm:$0xff]
        %v329 = vld [vmem:[#allocation2 + $0x20] sm:$0xff]
        %v330 = vld [vmem:[#allocation2 + $0x28] sm:$0xff]
        %v331 = vld [vmem:[#allocation2 + $0x30] sm:$0xff]
        %v332 = vld [vmem:[#allocation2 + $0x38] sm:$0xff]
        %v333 = vld [vmem:[#allocation2 + $0x40] sm:$0xff]
        %v334 = vld [vmem:[#allocation2 + $0x48] sm:$0xff]
        %v335 = vld [vmem:[#allocation2 + $0x50] sm:$0xff]
        %v336 = vld [vmem:[#allocation2 + $0x58] sm:$0xff]
        %v337 = vld [vmem:[#allocation2 + $0x60] sm:$0xff]
        %v338 = vld [vmem:[#allocation2 + $0x68] sm:$0xff]
        %v339 = vld [vmem:[#allocation2 + $0x70] sm:$0xff]
        %v340 = vld [vmem:[#allocation2 + $0x78] sm:$0xff]
        %v341 = vld [vmem:[%s2] sm:$0x1]
        %v343 = vperm.slane %v341, 0
        %v345 = vand.u32 %v340, 4294901760
        %346 = vmatpush.msra.mxu0 %v345
        %v347 = vand.u32 %v339, 4294901760
        %348 = vmatpush.msra.mxu0 %v347
        %v349 = vand.u32 %v338, 4294901760
        %350 = vmatpush.msra.mxu0 %v349
        %v351 = vand.u32 %v337, 4294901760
        %352 = vmatpush.msra.mxu0 %v351
        %v353 = vand.u32 %v336, 4294901760
        %354 = vmatpush.msra.mxu0 %v353
        %v355 = vand.u32 %v335, 4294901760
        %356 = vmatpush.msra.mxu0 %v355
        %v357 = vand.u32 %v334, 4294901760
        %358 = vmatpush.msra.mxu0 %v357
        %v359 = vand.u32 %v333, 4294901760
        %360 = vmatpush.msra.mxu0 %v359
        %v361 = vand.u32 %v332, 4294901760
        %362 = vmatpush.msra.mxu0 %v361
        %v363 = vand.u32 %v331, 4294901760
        %364 = vmatpush.msra.mxu0 %v363
        %v365 = vand.u32 %v330, 4294901760
        %366 = vmatpush.msra.mxu0 %v365
        %v367 = vand.u32 %v329, 4294901760
        %368 = vmatpush.msra.mxu0 %v367
        %v369 = vand.u32 %v328, 4294901760
        %370 = vmatpush.msra.mxu0 %v369
        %v371 = vand.u32 %v327, 4294901760
        %372 = vmatpush.msra.mxu0 %v371
        %v373 = vand.u32 %v326, 4294901760
        %374 = vmatpush.msra.mxu0 %v373
        %v375 = vand.u32 %v325, 4294901760
        %376 = vmatpush.msra.mxu0 %v375
        %v377 = vand.u32 %v324, 4294901760
        %v378 = vsub.f32 %v324, %v377
        %v379 = vand.u32 %v378, 4294901760
        %v380 = vsub.f32 %v378, %v379
        %v381 = vand.u32 %v380, 4294901760
        %382 = vmatmul.f32.gmra.mxu0 %v381
        %v383 = vpop.f32.mrf.mxu0
        %v384 = vadd.f32 %v343, %v383
        %385 = vdwg.mxu0
        %v386 = vand.u32 %v340, 4294901760
        %v387 = vsub.f32 %v340, %v386
        %v388 = vand.u32 %v387, 4294901760
        %v389 = vsub.f32 %v387, %v388
        %v390 = vand.u32 %v389, 4294901760
        %391 = vmatpush.msra.mxu0 %v390
        %v392 = vand.u32 %v339, 4294901760
        %v393 = vsub.f32 %v339, %v392
        %v394 = vand.u32 %v393, 4294901760
        %v395 = vsub.f32 %v393, %v394
        %v396 = vand.u32 %v395, 4294901760
        %397 = vmatpush.msra.mxu0 %v396
        %v398 = vand.u32 %v338, 4294901760
        %v399 = vsub.f32 %v338, %v398
        %v400 = vand.u32 %v399, 4294901760
        %v401 = vsub.f32 %v399, %v400
        %v402 = vand.u32 %v401, 4294901760
        %403 = vmatpush.msra.mxu0 %v402
        %v404 = vand.u32 %v337, 4294901760
        %v405 = vsub.f32 %v337, %v404
        %v406 = vand.u32 %v405, 4294901760
        %v407 = vsub.f32 %v405, %v406
        %v408 = vand.u32 %v407, 4294901760
        %409 = vmatpush.msra.mxu0 %v408
        %v410 = vand.u32 %v336, 4294901760
        %v411 = vsub.f32 %v336, %v410
        %v412 = vand.u32 %v411, 4294901760
        %v413 = vsub.f32 %v411, %v412
        %v414 = vand.u32 %v413, 4294901760
        %415 = vmatpush.msra.mxu0 %v414
        %v416 = vand.u32 %v335, 4294901760
        %v417 = vsub.f32 %v335, %v416
        %v418 = vand.u32 %v417, 4294901760
        %v419 = vsub.f32 %v417, %v418
        %v420 = vand.u32 %v419, 4294901760
        %421 = vmatpush.msra.mxu0 %v420
        %v422 = vand.u32 %v334, 4294901760
        %v423 = vsub.f32 %v334, %v422
        %v424 = vand.u32 %v423, 4294901760
        %v425 = vsub.f32 %v423, %v424
        %v426 = vand.u32 %v425, 4294901760
        %427 = vmatpush.msra.mxu0 %v426
        %v428 = vand.u32 %v333, 4294901760
        %v429 = vsub.f32 %v333, %v428
        %v430 = vand.u32 %v429, 4294901760
        %v431 = vsub.f32 %v429, %v430
        %v432 = vand.u32 %v431, 4294901760
        %433 = vmatpush.msra.mxu0 %v432
        %v434 = vand.u32 %v332, 4294901760
        %v435 = vsub.f32 %v332, %v434
        %v436 = vand.u32 %v435, 4294901760
        %v437 = vsub.f32 %v435, %v436
        %v438 = vand.u32 %v437, 4294901760
        %439 = vmatpush.msra.mxu0 %v438
        %v440 = vand.u32 %v331, 4294901760
        %v441 = vsub.f32 %v331, %v440
        %v442 = vand.u32 %v441, 4294901760
        %v443 = vsub.f32 %v441, %v442
        %v444 = vand.u32 %v443, 4294901760
        %445 = vmatpush.msra.mxu0 %v444
        %v446 = vand.u32 %v330, 4294901760
        %v447 = vsub.f32 %v330, %v446
        %v448 = vand.u32 %v447, 4294901760
        %v449 = vsub.f32 %v447, %v448
        %v450 = vand.u32 %v449, 4294901760
        %451 = vmatpush.msra.mxu0 %v450
        %v452 = vand.u32 %v329, 4294901760
        %v453 = vsub.f32 %v329, %v452
        %v454 = vand.u32 %v453, 4294901760
        %v455 = vsub.f32 %v453, %v454
        %v456 = vand.u32 %v455, 4294901760
        %457 = vmatpush.msra.mxu0 %v456
        %v458 = vand.u32 %v328, 4294901760
        %v459 = vsub.f32 %v328, %v458
        %v460 = vand.u32 %v459, 4294901760
        %v461 = vsub.f32 %v459, %v460
        %v462 = vand.u32 %v461, 4294901760
        %463 = vmatpush.msra.mxu0 %v462
        %v464 = vand.u32 %v327, 4294901760
        %v465 = vsub.f32 %v327, %v464
        %v466 = vand.u32 %v465, 4294901760
        %v467 = vsub.f32 %v465, %v466
        %v468 = vand.u32 %v467, 4294901760
        %469 = vmatpush.msra.mxu0 %v468
        %v470 = vand.u32 %v326, 4294901760
        %v471 = vsub.f32 %v326, %v470
        %v472 = vand.u32 %v471, 4294901760
        %v473 = vsub.f32 %v471, %v472
        %v474 = vand.u32 %v473, 4294901760
        %475 = vmatpush.msra.mxu0 %v474
        %v476 = vand.u32 %v325, 4294901760
        %v477 = vsub.f32 %v325, %v476
        %v478 = vand.u32 %v477, 4294901760
        %v479 = vsub.f32 %v477, %v478
        %v480 = vand.u32 %v479, 4294901760
        %481 = vmatpush.msra.mxu0 %v480
        %v482 = vand.u32 %v324, 4294901760
        %483 = vmatmul.f32.gmra.mxu0 %v482
        %v484 = vpop.f32.mrf.mxu0
        %v485 = vadd.f32 %v384, %v484
        %486 = vdwg.mxu0
        %v487 = vand.u32 %v340, 4294901760
        %v488 = vsub.f32 %v340, %v487
        %489 = vmatpush.msra.mxu0 %v488
        %v490 = vand.u32 %v339, 4294901760
        %v491 = vsub.f32 %v339, %v490
        %492 = vmatpush.msra.mxu0 %v491
        %v493 = vand.u32 %v338, 4294901760
        %v494 = vsub.f32 %v338, %v493
        %495 = vmatpush.msra.mxu0 %v494
        %v496 = vand.u32 %v337, 4294901760
        %v497 = vsub.f32 %v337, %v496
        %498 = vmatpush.msra.mxu0 %v497
        %v499 = vand.u32 %v336, 4294901760
        %v500 = vsub.f32 %v336, %v499
        %501 = vmatpush.msra.mxu0 %v500
        %v502 = vand.u32 %v335, 4294901760
        %v503 = vsub.f32 %v335, %v502
        %504 = vmatpush.msra.mxu0 %v503
        %v505 = vand.u32 %v334, 4294901760
        %v506 = vsub.f32 %v334, %v505
        %507 = vmatpush.msra.mxu0 %v506
        %v508 = vand.u32 %v333, 4294901760
        %v509 = vsub.f32 %v333, %v508
        %510 = vmatpush.msra.mxu0 %v509
        %v511 = vand.u32 %v332, 4294901760
        %v512 = vsub.f32 %v332, %v511
        %513 = vmatpush.msra.mxu0 %v512
        %v514 = vand.u32 %v331, 4294901760
        %v515 = vsub.f32 %v331, %v514
        %516 = vmatpush.msra.mxu0 %v515
        %v517 = vand.u32 %v330, 4294901760
        %v518 = vsub.f32 %v330, %v517
        %519 = vmatpush.msra.mxu0 %v518
        %v520 = vand.u32 %v329, 4294901760
        %v521 = vsub.f32 %v329, %v520
        %522 = vmatpush.msra.mxu0 %v521
        %v523 = vand.u32 %v328, 4294901760
        %v524 = vsub.f32 %v328, %v523
        %525 = vmatpush.msra.mxu0 %v524
        %v526 = vand.u32 %v327, 4294901760
        %v527 = vsub.f32 %v327, %v526
        %528 = vmatpush.msra.mxu0 %v527
        %v529 = vand.u32 %v326, 4294901760
        %v530 = vsub.f32 %v326, %v529
        %531 = vmatpush.msra.mxu0 %v530
        %v532 = vand.u32 %v325, 4294901760
        %v533 = vsub.f32 %v325, %v532
        %534 = vmatpush.msra.mxu0 %v533
        %v535 = vand.u32 %v324, 4294901760
        %v536 = vsub.f32 %v324, %v535
        %537 = vmatmul.f32.gmra.mxu0 %v536
        %v538 = vpop.f32.mrf.mxu0
        %v539 = vadd.f32 %v485, %v538
        %540 = vdwg.mxu0
        %v541 = vand.u32 %v340, 4294901760
        %542 = vmatpush.msra.mxu0 %v541
        %v543 = vand.u32 %v339, 4294901760
        %544 = vmatpush.msra.mxu0 %v543
        %v545 = vand.u32 %v338, 4294901760
        %546 = vmatpush.msra.mxu0 %v545
        %v547 = vand.u32 %v337, 4294901760
        %548 = vmatpush.msra.mxu0 %v547
        %v549 = vand.u32 %v336, 4294901760
        %550 = vmatpush.msra.mxu0 %v549
        %v551 = vand.u32 %v335, 4294901760
        %552 = vmatpush.msra.mxu0 %v551
        %v553 = vand.u32 %v334, 4294901760
        %554 = vmatpush.msra.mxu0 %v553
        %v555 = vand.u32 %v333, 4294901760
        %556 = vmatpush.msra.mxu0 %v555
        %v557 = vand.u32 %v332, 4294901760
        %558 = vmatpush.msra.mxu0 %v557
        %v559 = vand.u32 %v331, 4294901760
        %560 = vmatpush.msra.mxu0 %v559
        %v561 = vand.u32 %v330, 4294901760
        %562 = vmatpush.msra.mxu0 %v561
        %v563 = vand.u32 %v329, 4294901760
        %564 = vmatpush.msra.mxu0 %v563
        %v565 = vand.u32 %v328, 4294901760
        %566 = vmatpush.msra.mxu0 %v565
        %v567 = vand.u32 %v327, 4294901760
        %568 = vmatpush.msra.mxu0 %v567
        %v569 = vand.u32 %v326, 4294901760
        %570 = vmatpush.msra.mxu0 %v569
        %v571 = vand.u32 %v325, 4294901760
        %572 = vmatpush.msra.mxu0 %v571
        %v573 = vand.u32 %v324, 4294901760
        %v574 = vsub.f32 %v324, %v573
        %v575 = vand.u32 %v574, 4294901760
        %576 = vmatmul.f32.gmra.mxu0 %v575
        %v577 = vpop.f32.mrf.mxu0
        %v578 = vadd.f32 %v539, %v577
        %579 = vdwg.mxu0
        %v580 = vand.u32 %v340, 4294901760
        %v581 = vsub.f32 %v340, %v580
        %v582 = vand.u32 %v581, 4294901760
        %583 = vmatpush.msra.mxu0 %v582
        %v584 = vand.u32 %v339, 4294901760
        %v585 = vsub.f32 %v339, %v584
        %v586 = vand.u32 %v585, 4294901760
        %587 = vmatpush.msra.mxu0 %v586
        %v588 = vand.u32 %v338, 4294901760
        %v589 = vsub.f32 %v338, %v588
        %v590 = vand.u32 %v589, 4294901760
        %591 = vmatpush.msra.mxu0 %v590
        %v592 = vand.u32 %v337, 4294901760
        %v593 = vsub.f32 %v337, %v592
        %v594 = vand.u32 %v593, 4294901760
        %595 = vmatpush.msra.mxu0 %v594
        %v596 = vand.u32 %v336, 4294901760
        %v597 = vsub.f32 %v336, %v596
        %v598 = vand.u32 %v597, 4294901760
        %599 = vmatpush.msra.mxu0 %v598
        %v600 = vand.u32 %v335, 4294901760
        %v601 = vsub.f32 %v335, %v600
        %v602 = vand.u32 %v601, 4294901760
        %603 = vmatpush.msra.mxu0 %v602
        %v604 = vand.u32 %v334, 4294901760
        %v605 = vsub.f32 %v334, %v604
        %v606 = vand.u32 %v605, 4294901760
        %607 = vmatpush.msra.mxu0 %v606
        %v608 = vand.u32 %v333, 4294901760
        %v609 = vsub.f32 %v333, %v608
        %v610 = vand.u32 %v609, 4294901760
        %611 = vmatpush.msra.mxu0 %v610
        %v612 = vand.u32 %v332, 4294901760
        %v613 = vsub.f32 %v332, %v612
        %v614 = vand.u32 %v613, 4294901760
        %615 = vmatpush.msra.mxu0 %v614
        %v616 = vand.u32 %v331, 4294901760
        %v617 = vsub.f32 %v331, %v616
        %v618 = vand.u32 %v617, 4294901760
        %619 = vmatpush.msra.mxu0 %v618
        %v620 = vand.u32 %v330, 4294901760
        %v621 = vsub.f32 %v330, %v620
        %v622 = vand.u32 %v621, 4294901760
        %623 = vmatpush.msra.mxu0 %v622
        %v624 = vand.u32 %v329, 4294901760
        %v625 = vsub.f32 %v329, %v624
        %v626 = vand.u32 %v625, 4294901760
        %627 = vmatpush.msra.mxu0 %v626
        %v628 = vand.u32 %v328, 4294901760
        %v629 = vsub.f32 %v328, %v628
        %v630 = vand.u32 %v629, 4294901760
        %631 = vmatpush.msra.mxu0 %v630
        %v632 = vand.u32 %v327, 4294901760
        %v633 = vsub.f32 %v327, %v632
        %v634 = vand.u32 %v633, 4294901760
        %635 = vmatpush.msra.mxu0 %v634
        %v636 = vand.u32 %v326, 4294901760
        %v637 = vsub.f32 %v326, %v636
        %v638 = vand.u32 %v637, 4294901760
        %639 = vmatpush.msra.mxu0 %v638
        %v640 = vand.u32 %v325, 4294901760
        %v641 = vsub.f32 %v325, %v640
        %v642 = vand.u32 %v641, 4294901760
        %643 = vmatpush.msra.mxu0 %v642
        %v644 = vand.u32 %v324, 4294901760
        %645 = vmatmul.f32.gmra.mxu0 %v644
        %v646 = vpop.f32.mrf.mxu0
        %v647 = vadd.f32 %v578, %v646
        %648 = vdwg.mxu0
        %v649 = vand.u32 %v340, 4294901760
        %650 = vmatpush.msra.mxu0 %v649
        %v651 = vand.u32 %v339, 4294901760
        %652 = vmatpush.msra.mxu0 %v651
        %v653 = vand.u32 %v338, 4294901760
        %654 = vmatpush.msra.mxu0 %v653
        %v655 = vand.u32 %v337, 4294901760
        %656 = vmatpush.msra.mxu0 %v655
        %v657 = vand.u32 %v336, 4294901760
        %658 = vmatpush.msra.mxu0 %v657
        %v659 = vand.u32 %v335, 4294901760
        %660 = vmatpush.msra.mxu0 %v659
        %v661 = vand.u32 %v334, 4294901760
        %662 = vmatpush.msra.mxu0 %v661
        %v663 = vand.u32 %v333, 4294901760
        %664 = vmatpush.msra.mxu0 %v663
        %v665 = vand.u32 %v332, 4294901760
        %666 = vmatpush.msra.mxu0 %v665
        %v667 = vand.u32 %v331, 4294901760
        %668 = vmatpush.msra.mxu0 %v667
        %v669 = vand.u32 %v330, 4294901760
        %670 = vmatpush.msra.mxu0 %v669
        %v671 = vand.u32 %v329, 4294901760
        %672 = vmatpush.msra.mxu0 %v671
        %v673 = vand.u32 %v328, 4294901760
        %674 = vmatpush.msra.mxu0 %v673
        %v675 = vand.u32 %v327, 4294901760
        %676 = vmatpush.msra.mxu0 %v675
        %v677 = vand.u32 %v326, 4294901760
        %678 = vmatpush.msra.mxu0 %v677
        %v679 = vand.u32 %v325, 4294901760
        %680 = vmatpush.msra.mxu0 %v679
        %v681 = vand.u32 %v324, 4294901760
        %682 = vmatmul.f32.gmra.mxu0 %v681
        %v683 = vpop.f32.mrf.mxu0
        %v684 = vadd.f32 %v647, %v683
        %685 = vdwg.mxu0
        %v686 = vmax.f32 %v684, 0.0
        %v687 = vld [vmem:[#allocation5] sm:$0xff]
        %v688 = vld [vmem:[#allocation5 + $0x8] sm:$0xff]
        %v689 = vld [vmem:[#allocation5 + $0x10] sm:$0xff]
        %v690 = vld [vmem:[#allocation5 + $0x18] sm:$0xff]
        %v691 = vld [vmem:[#allocation5 + $0x20] sm:$0xff]
        %v692 = vld [vmem:[#allocation5 + $0x28] sm:$0xff]
        %v693 = vld [vmem:[#allocation5 + $0x30] sm:$0xff]
        %v694 = vld [vmem:[#allocation5 + $0x38] sm:$0xff]
        %v695 = vld [vmem:[#allocation5 + $0x40] sm:$0xff]
        %v696 = vld [vmem:[#allocation5 + $0x48] sm:$0xff]
        %v697 = vld [vmem:[#allocation5 + $0x50] sm:$0xff]
        %v698 = vld [vmem:[#allocation5 + $0x58] sm:$0xff]
        %v699 = vld [vmem:[#allocation5 + $0x60] sm:$0xff]
        %v700 = vld [vmem:[#allocation5 + $0x68] sm:$0xff]
        %v701 = vld [vmem:[#allocation5 + $0x70] sm:$0xff]
        %v702 = vld [vmem:[#allocation5 + $0x78] sm:$0xff]
        %v703 = vld [vmem:[%s4] sm:$0x1]
        %v705 = vperm.slane %v703, 0
        %v707 = vand.u32 %v702, 4294901760
        %708 = vmatpush.msra.mxu0 %v707
        %v709 = vand.u32 %v701, 4294901760
        %710 = vmatpush.msra.mxu0 %v709
        %v711 = vand.u32 %v700, 4294901760
        %712 = vmatpush.msra.mxu0 %v711
        %v713 = vand.u32 %v699, 4294901760
        %714 = vmatpush.msra.mxu0 %v713
        %v715 = vand.u32 %v698, 4294901760
        %716 = vmatpush.msra.mxu0 %v715
        %v717 = vand.u32 %v697, 4294901760
        %718 = vmatpush.msra.mxu0 %v717
        %v719 = vand.u32 %v696, 4294901760
        %720 = vmatpush.msra.mxu0 %v719
        %v721 = vand.u32 %v695, 4294901760
        %722 = vmatpush.msra.mxu0 %v721
        %v723 = vand.u32 %v694, 4294901760
        %724 = vmatpush.msra.mxu0 %v723
        %v725 = vand.u32 %v693, 4294901760
        %726 = vmatpush.msra.mxu0 %v725
        %v727 = vand.u32 %v692, 4294901760
        %728 = vmatpush.msra.mxu0 %v727
        %v729 = vand.u32 %v691, 4294901760
        %730 = vmatpush.msra.mxu0 %v729
        %v731 = vand.u32 %v690, 4294901760
        %732 = vmatpush.msra.mxu0 %v731
        %v733 = vand.u32 %v689, 4294901760
        %734 = vmatpush.msra.mxu0 %v733
        %v735 = vand.u32 %v688, 4294901760
        %736 = vmatpush.msra.mxu0 %v735
        %v737 = vand.u32 %v687, 4294901760
        %738 = vmatpush.msra.mxu0 %v737
        %v739 = vand.u32 %v686, 4294901760
        %v740 = vsub.f32 %v686, %v739
        %v741 = vand.u32 %v740, 4294901760
        %v742 = vsub.f32 %v740, %v741
        %v743 = vand.u32 %v742, 4294901760
        %744 = vmatmul.f32.gmra.mxu0 %v743
        %v745 = vpop.f32.mrf.mxu0
        %v746 = vadd.f32 %v705, %v745
        %747 = vdwg.mxu0
        %v748 = vand.u32 %v702, 4294901760
        %v749 = vsub.f32 %v702, %v748
        %v750 = vand.u32 %v749, 4294901760
        %v751 = vsub.f32 %v749, %v750
        %v752 = vand.u32 %v751, 4294901760
        %753 = vmatpush.msra.mxu0 %v752
        %v754 = vand.u32 %v701, 4294901760
        %v755 = vsub.f32 %v701, %v754
        %v756 = vand.u32 %v755, 4294901760
        %v757 = vsub.f32 %v755, %v756
        %v758 = vand.u32 %v757, 4294901760
        %759 = vmatpush.msra.mxu0 %v758
        %v760 = vand.u32 %v700, 4294901760
        %v761 = vsub.f32 %v700, %v760
        %v762 = vand.u32 %v761, 4294901760
        %v763 = vsub.f32 %v761, %v762
        %v764 = vand.u32 %v763, 4294901760
        %765 = vmatpush.msra.mxu0 %v764
        %v766 = vand.u32 %v699, 4294901760
        %v767 = vsub.f32 %v699, %v766
        %v768 = vand.u32 %v767, 4294901760
        %v769 = vsub.f32 %v767, %v768
        %v770 = vand.u32 %v769, 4294901760
        %771 = vmatpush.msra.mxu0 %v770
        %v772 = vand.u32 %v698, 4294901760
        %v773 = vsub.f32 %v698, %v772
        %v774 = vand.u32 %v773, 4294901760
        %v775 = vsub.f32 %v773, %v774
        %v776 = vand.u32 %v775, 4294901760
        %777 = vmatpush.msra.mxu0 %v776
        %v778 = vand.u32 %v697, 4294901760
        %v779 = vsub.f32 %v697, %v778
        %v780 = vand.u32 %v779, 4294901760
        %v781 = vsub.f32 %v779, %v780
        %v782 = vand.u32 %v781, 4294901760
        %783 = vmatpush.msra.mxu0 %v782
        %v784 = vand.u32 %v696, 4294901760
        %v785 = vsub.f32 %v696, %v784
        %v786 = vand.u32 %v785, 4294901760
        %v787 = vsub.f32 %v785, %v786
        %v788 = vand.u32 %v787, 4294901760
        %789 = vmatpush.msra.mxu0 %v788
        %v790 = vand.u32 %v695, 4294901760
        %v791 = vsub.f32 %v695, %v790
        %v792 = vand.u32 %v791, 4294901760
        %v793 = vsub.f32 %v791, %v792
        %v794 = vand.u32 %v793, 4294901760
        %795 = vmatpush.msra.mxu0 %v794
        %v796 = vand.u32 %v694, 4294901760
        %v797 = vsub.f32 %v694, %v796
        %v798 = vand.u32 %v797, 4294901760
        %v799 = vsub.f32 %v797, %v798
        %v800 = vand.u32 %v799, 4294901760
        %801 = vmatpush.msra.mxu0 %v800
        %v802 = vand.u32 %v693, 4294901760
        %v803 = vsub.f32 %v693, %v802
        %v804 = vand.u32 %v803, 4294901760
        %v805 = vsub.f32 %v803, %v804
        %v806 = vand.u32 %v805, 4294901760
        %807 = vmatpush.msra.mxu0 %v806
        %v808 = vand.u32 %v692, 4294901760
        %v809 = vsub.f32 %v692, %v808
        %v810 = vand.u32 %v809, 4294901760
        %v811 = vsub.f32 %v809, %v810
        %v812 = vand.u32 %v811, 4294901760
        %813 = vmatpush.msra.mxu0 %v812
        %v814 = vand.u32 %v691, 4294901760
        %v815 = vsub.f32 %v691, %v814
        %v816 = vand.u32 %v815, 4294901760
        %v817 = vsub.f32 %v815, %v816
        %v818 = vand.u32 %v817, 4294901760
        %819 = vmatpush.msra.mxu0 %v818
        %v820 = vand.u32 %v690, 4294901760
        %v821 = vsub.f32 %v690, %v820
        %v822 = vand.u32 %v821, 4294901760
        %v823 = vsub.f32 %v821, %v822
        %v824 = vand.u32 %v823, 4294901760
        %825 = vmatpush.msra.mxu0 %v824
        %v826 = vand.u32 %v689, 4294901760
        %v827 = vsub.f32 %v689, %v826
        %v828 = vand.u32 %v827, 4294901760
        %v829 = vsub.f32 %v827, %v828
        %v830 = vand.u32 %v829, 4294901760
        %831 = vmatpush.msra.mxu0 %v830
        %v832 = vand.u32 %v688, 4294901760
        %v833 = vsub.f32 %v688, %v832
        %v834 = vand.u32 %v833, 4294901760
        %v835 = vsub.f32 %v833, %v834
        %v836 = vand.u32 %v835, 4294901760
        %837 = vmatpush.msra.mxu0 %v836
        %v838 = vand.u32 %v687, 4294901760
        %v839 = vsub.f32 %v687, %v838
        %v840 = vand.u32 %v839, 4294901760
        %v841 = vsub.f32 %v839, %v840
        %v842 = vand.u32 %v841, 4294901760
        %843 = vmatpush.msra.mxu0 %v842
        %v844 = vand.u32 %v686, 4294901760
        %845 = vmatmul.f32.gmra.mxu0 %v844
        %v846 = vpop.f32.mrf.mxu0
        %v847 = vadd.f32 %v746, %v846
        %848 = vdwg.mxu0
        %v849 = vand.u32 %v702, 4294901760
        %v850 = vsub.f32 %v702, %v849
        %851 = vmatpush.msra.mxu0 %v850
        %v852 = vand.u32 %v701, 4294901760
        %v853 = vsub.f32 %v701, %v852
        %854 = vmatpush.msra.mxu0 %v853
        %v855 = vand.u32 %v700, 4294901760
        %v856 = vsub.f32 %v700, %v855
        %857 = vmatpush.msra.mxu0 %v856
        %v858 = vand.u32 %v699, 4294901760
        %v859 = vsub.f32 %v699, %v858
        %860 = vmatpush.msra.mxu0 %v859
        %v861 = vand.u32 %v698, 4294901760
        %v862 = vsub.f32 %v698, %v861
        %863 = vmatpush.msra.mxu0 %v862
        %v864 = vand.u32 %v697, 4294901760
        %v865 = vsub.f32 %v697, %v864
        %866 = vmatpush.msra.mxu0 %v865
        %v867 = vand.u32 %v696, 4294901760
        %v868 = vsub.f32 %v696, %v867
        %869 = vmatpush.msra.mxu0 %v868
        %v870 = vand.u32 %v695, 4294901760
        %v871 = vsub.f32 %v695, %v870
        %872 = vmatpush.msra.mxu0 %v871
        %v873 = vand.u32 %v694, 4294901760
        %v874 = vsub.f32 %v694, %v873
        %875 = vmatpush.msra.mxu0 %v874
        %v876 = vand.u32 %v693, 4294901760
        %v877 = vsub.f32 %v693, %v876
        %878 = vmatpush.msra.mxu0 %v877
        %v879 = vand.u32 %v692, 4294901760
        %v880 = vsub.f32 %v692, %v879
        %881 = vmatpush.msra.mxu0 %v880
        %v882 = vand.u32 %v691, 4294901760
        %v883 = vsub.f32 %v691, %v882
        %884 = vmatpush.msra.mxu0 %v883
        %v885 = vand.u32 %v690, 4294901760
        %v886 = vsub.f32 %v690, %v885
        %887 = vmatpush.msra.mxu0 %v886
        %v888 = vand.u32 %v689, 4294901760
        %v889 = vsub.f32 %v689, %v888
        %890 = vmatpush.msra.mxu0 %v889
        %v891 = vand.u32 %v688, 4294901760
        %v892 = vsub.f32 %v688, %v891
        %893 = vmatpush.msra.mxu0 %v892
        %v894 = vand.u32 %v687, 4294901760
        %v895 = vsub.f32 %v687, %v894
        %896 = vmatpush.msra.mxu0 %v895
        %v897 = vand.u32 %v686, 4294901760
        %v898 = vsub.f32 %v686, %v897
        %899 = vmatmul.f32.gmra.mxu0 %v898
        %v900 = vpop.f32.mrf.mxu0
        %v901 = vadd.f32 %v847, %v900
        %902 = vdwg.mxu0
        %v903 = vand.u32 %v702, 4294901760
        %904 = vmatpush.msra.mxu0 %v903
        %v905 = vand.u32 %v701, 4294901760
        %906 = vmatpush.msra.mxu0 %v905
        %v907 = vand.u32 %v700, 4294901760
        %908 = vmatpush.msra.mxu0 %v907
        %v909 = vand.u32 %v699, 4294901760
        %910 = vmatpush.msra.mxu0 %v909
        %v911 = vand.u32 %v698, 4294901760
        %912 = vmatpush.msra.mxu0 %v911
        %v913 = vand.u32 %v697, 4294901760
        %914 = vmatpush.msra.mxu0 %v913
        %v915 = vand.u32 %v696, 4294901760
        %916 = vmatpush.msra.mxu0 %v915
        %v917 = vand.u32 %v695, 4294901760
        %918 = vmatpush.msra.mxu0 %v917
        %v919 = vand.u32 %v694, 4294901760
        %920 = vmatpush.msra.mxu0 %v919
        %v921 = vand.u32 %v693, 4294901760
        %922 = vmatpush.msra.mxu0 %v921
        %v923 = vand.u32 %v692, 4294901760
        %924 = vmatpush.msra.mxu0 %v923
        %v925 = vand.u32 %v691, 4294901760
        %926 = vmatpush.msra.mxu0 %v925
        %v927 = vand.u32 %v690, 4294901760
        %928 = vmatpush.msra.mxu0 %v927
        %v929 = vand.u32 %v689, 4294901760
        %930 = vmatpush.msra.mxu0 %v929
        %v931 = vand.u32 %v688, 4294901760
        %932 = vmatpush.msra.mxu0 %v931
        %v933 = vand.u32 %v687, 4294901760
        %934 = vmatpush.msra.mxu0 %v933
        %v935 = vand.u32 %v686, 4294901760
        %v936 = vsub.f32 %v686, %v935
        %v937 = vand.u32 %v936, 4294901760
        %938 = vmatmul.f32.gmra.mxu0 %v937
        %v939 = vpop.f32.mrf.mxu0
        %v940 = vadd.f32 %v901, %v939
        %941 = vdwg.mxu0
        %v942 = vand.u32 %v702, 4294901760
        %v943 = vsub.f32 %v702, %v942
        %v944 = vand.u32 %v943, 4294901760
        %945 = vmatpush.msra.mxu0 %v944
        %v946 = vand.u32 %v701, 4294901760
        %v947 = vsub.f32 %v701, %v946
        %v948 = vand.u32 %v947, 4294901760
        %949 = vmatpush.msra.mxu0 %v948
        %v950 = vand.u32 %v700, 4294901760
        %v951 = vsub.f32 %v700, %v950
        %v952 = vand.u32 %v951, 4294901760
        %953 = vmatpush.msra.mxu0 %v952
        %v954 = vand.u32 %v699, 4294901760
        %v955 = vsub.f32 %v699, %v954
        %v956 = vand.u32 %v955, 4294901760
        %957 = vmatpush.msra.mxu0 %v956
        %v958 = vand.u32 %v698, 4294901760
        %v959 = vsub.f32 %v698, %v958
        %v960 = vand.u32 %v959, 4294901760
        %961 = vmatpush.msra.mxu0 %v960
        %v962 = vand.u32 %v697, 4294901760
        %v963 = vsub.f32 %v697, %v962
        %v964 = vand.u32 %v963, 4294901760
        %965 = vmatpush.msra.mxu0 %v964
        %v966 = vand.u32 %v696, 4294901760
        %v967 = vsub.f32 %v696, %v966
        %v968 = vand.u32 %v967, 4294901760
        %969 = vmatpush.msra.mxu0 %v968
        %v970 = vand.u32 %v695, 4294901760
        %v971 = vsub.f32 %v695, %v970
        %v972 = vand.u32 %v971, 4294901760
        %973 = vmatpush.msra.mxu0 %v972
        %v974 = vand.u32 %v694, 4294901760
        %v975 = vsub.f32 %v694, %v974
        %v976 = vand.u32 %v975, 4294901760
        %977 = vmatpush.msra.mxu0 %v976
        %v978 = vand.u32 %v693, 4294901760
        %v979 = vsub.f32 %v693, %v978
        %v980 = vand.u32 %v979, 4294901760
        %981 = vmatpush.msra.mxu0 %v980
        %v982 = vand.u32 %v692, 4294901760
        %v983 = vsub.f32 %v692, %v982
        %v984 = vand.u32 %v983, 4294901760
        %985 = vmatpush.msra.mxu0 %v984
        %v986 = vand.u32 %v691, 4294901760
        %v987 = vsub.f32 %v691, %v986
        %v988 = vand.u32 %v987, 4294901760
        %989 = vmatpush.msra.mxu0 %v988
        %v990 = vand.u32 %v690, 4294901760
        %v991 = vsub.f32 %v690, %v990
        %v992 = vand.u32 %v991, 4294901760
        %993 = vmatpush.msra.mxu0 %v992
        %v994 = vand.u32 %v689, 4294901760
        %v995 = vsub.f32 %v689, %v994
        %v996 = vand.u32 %v995, 4294901760
        %997 = vmatpush.msra.mxu0 %v996
        %v998 = vand.u32 %v688, 4294901760
        %v999 = vsub.f32 %v688, %v998
        %v1000 = vand.u32 %v999, 4294901760
        %1001 = vmatpush.msra.mxu0 %v1000
        %v1002 = vand.u32 %v687, 4294901760
        %v1003 = vsub.f32 %v687, %v1002
        %v1004 = vand.u32 %v1003, 4294901760
        %1005 = vmatpush.msra.mxu0 %v1004
        %v1006 = vand.u32 %v686, 4294901760
        %1007 = vmatmul.f32.gmra.mxu0 %v1006
        %v1008 = vpop.f32.mrf.mxu0
        %v1009 = vadd.f32 %v940, %v1008
        %1010 = vdwg.mxu0
        %v1011 = vand.u32 %v702, 4294901760
        %1012 = vmatpush.msra.mxu0 %v1011
        %v1013 = vand.u32 %v701, 4294901760
        %1014 = vmatpush.msra.mxu0 %v1013
        %v1015 = vand.u32 %v700, 4294901760
        %1016 = vmatpush.msra.mxu0 %v1015
        %v1017 = vand.u32 %v699, 4294901760
        %1018 = vmatpush.msra.mxu0 %v1017
        %v1019 = vand.u32 %v698, 4294901760
        %1020 = vmatpush.msra.mxu0 %v1019
        %v1021 = vand.u32 %v697, 4294901760
        %1022 = vmatpush.msra.mxu0 %v1021
        %v1023 = vand.u32 %v696, 4294901760
        %1024 = vmatpush.msra.mxu0 %v1023
        %v1025 = vand.u32 %v695, 4294901760
        %1026 = vmatpush.msra.mxu0 %v1025
        %v1027 = vand.u32 %v694, 4294901760
        %1028 = vmatpush.msra.mxu0 %v1027
        %v1029 = vand.u32 %v693, 4294901760
        %1030 = vmatpush.msra.mxu0 %v1029
        %v1031 = vand.u32 %v692, 4294901760
        %1032 = vmatpush.msra.mxu0 %v1031
        %v1033 = vand.u32 %v691, 4294901760
        %1034 = vmatpush.msra.mxu0 %v1033
        %v1035 = vand.u32 %v690, 4294901760
        %1036 = vmatpush.msra.mxu0 %v1035
        %v1037 = vand.u32 %v689, 4294901760
        %1038 = vmatpush.msra.mxu0 %v1037
        %v1039 = vand.u32 %v688, 4294901760
        %1040 = vmatpush.msra.mxu0 %v1039
        %v1041 = vand.u32 %v687, 4294901760
        %1042 = vmatpush.msra.mxu0 %v1041
        %v1043 = vand.u32 %v686, 4294901760
        %1044 = vmatmul.f32.gmra.mxu0 %v1043
        %v1045 = vpop.f32.mrf.mxu0
        %v1046 = vadd.f32 %v1009, %v1045
        %1047 = vdwg.mxu0
        %v1048 = vmax.f32 %v1046, 0.0
        %v1049 = vld [vmem:[#allocation7] sm:$0xff]
        %v1050 = vld [vmem:[#allocation7 + $0x8] sm:$0xff]
        %v1051 = vld [vmem:[#allocation7 + $0x10] sm:$0xff]
        %v1052 = vld [vmem:[#allocation7 + $0x18] sm:$0xff]
        %v1053 = vld [vmem:[#allocation7 + $0x20] sm:$0xff]
        %v1054 = vld [vmem:[#allocation7 + $0x28] sm:$0xff]
        %v1055 = vld [vmem:[#allocation7 + $0x30] sm:$0xff]
        %v1056 = vld [vmem:[#allocation7 + $0x38] sm:$0xff]
        %v1057 = vld [vmem:[#allocation7 + $0x40] sm:$0xff]
        %v1058 = vld [vmem:[#allocation7 + $0x48] sm:$0xff]
        %v1059 = vld [vmem:[#allocation7 + $0x50] sm:$0xff]
        %v1060 = vld [vmem:[#allocation7 + $0x58] sm:$0xff]
        %v1061 = vld [vmem:[#allocation7 + $0x60] sm:$0xff]
        %v1062 = vld [vmem:[#allocation7 + $0x68] sm:$0xff]
        %v1063 = vld [vmem:[#allocation7 + $0x70] sm:$0xff]
        %v1064 = vld [vmem:[#allocation7 + $0x78] sm:$0xff]
        %v1065 = vld [vmem:[%s6] sm:$0x1]
        %v1067 = vperm.slane %v1065, 0
        %v1069 = vand.u32 %v1064, 4294901760
        %1070 = vmatpush.msra.mxu0 %v1069
        %v1071 = vand.u32 %v1063, 4294901760
        %1072 = vmatpush.msra.mxu0 %v1071
        %v1073 = vand.u32 %v1062, 4294901760
        %1074 = vmatpush.msra.mxu0 %v1073
        %v1075 = vand.u32 %v1061, 4294901760
        %1076 = vmatpush.msra.mxu0 %v1075
        %v1077 = vand.u32 %v1060, 4294901760
        %1078 = vmatpush.msra.mxu0 %v1077
        %v1079 = vand.u32 %v1059, 4294901760
        %1080 = vmatpush.msra.mxu0 %v1079
        %v1081 = vand.u32 %v1058, 4294901760
        %1082 = vmatpush.msra.mxu0 %v1081
        %v1083 = vand.u32 %v1057, 4294901760
        %1084 = vmatpush.msra.mxu0 %v1083
        %v1085 = vand.u32 %v1056, 4294901760
        %1086 = vmatpush.msra.mxu0 %v1085
        %v1087 = vand.u32 %v1055, 4294901760
        %1088 = vmatpush.msra.mxu0 %v1087
        %v1089 = vand.u32 %v1054, 4294901760
        %1090 = vmatpush.msra.mxu0 %v1089
        %v1091 = vand.u32 %v1053, 4294901760
        %1092 = vmatpush.msra.mxu0 %v1091
        %v1093 = vand.u32 %v1052, 4294901760
        %1094 = vmatpush.msra.mxu0 %v1093
        %v1095 = vand.u32 %v1051, 4294901760
        %1096 = vmatpush.msra.mxu0 %v1095
        %v1097 = vand.u32 %v1050, 4294901760
        %1098 = vmatpush.msra.mxu0 %v1097
        %v1099 = vand.u32 %v1049, 4294901760
        %1100 = vmatpush.msra.mxu0 %v1099
        %v1101 = vand.u32 %v1048, 4294901760
        %v1102 = vsub.f32 %v1048, %v1101
        %v1103 = vand.u32 %v1102, 4294901760
        %v1104 = vsub.f32 %v1102, %v1103
        %v1105 = vand.u32 %v1104, 4294901760
        %1106 = vmatmul.f32.gmra.mxu0 %v1105
        %v1107 = vpop.f32.mrf.mxu0
        %v1108 = vadd.f32 %v1067, %v1107
        %1109 = vdwg.mxu0
        %v1110 = vand.u32 %v1064, 4294901760
        %v1111 = vsub.f32 %v1064, %v1110
        %v1112 = vand.u32 %v1111, 4294901760
        %v1113 = vsub.f32 %v1111, %v1112
        %v1114 = vand.u32 %v1113, 4294901760
        %1115 = vmatpush.msra.mxu0 %v1114
        %v1116 = vand.u32 %v1063, 4294901760
        %v1117 = vsub.f32 %v1063, %v1116
        %v1118 = vand.u32 %v1117, 4294901760
        %v1119 = vsub.f32 %v1117, %v1118
        %v1120 = vand.u32 %v1119, 4294901760
        %1121 = vmatpush.msra.mxu0 %v1120
        %v1122 = vand.u32 %v1062, 4294901760
        %v1123 = vsub.f32 %v1062, %v1122
        %v1124 = vand.u32 %v1123, 4294901760
        %v1125 = vsub.f32 %v1123, %v1124
        %v1126 = vand.u32 %v1125, 4294901760
        %1127 = vmatpush.msra.mxu0 %v1126
        %v1128 = vand.u32 %v1061, 4294901760
        %v1129 = vsub.f32 %v1061, %v1128
        %v1130 = vand.u32 %v1129, 4294901760
        %v1131 = vsub.f32 %v1129, %v1130
        %v1132 = vand.u32 %v1131, 4294901760
        %1133 = vmatpush.msra.mxu0 %v1132
        %v1134 = vand.u32 %v1060, 4294901760
        %v1135 = vsub.f32 %v1060, %v1134
        %v1136 = vand.u32 %v1135, 4294901760
        %v1137 = vsub.f32 %v1135, %v1136
        %v1138 = vand.u32 %v1137, 4294901760
        %1139 = vmatpush.msra.mxu0 %v1138
        %v1140 = vand.u32 %v1059, 4294901760
        %v1141 = vsub.f32 %v1059, %v1140
        %v1142 = vand.u32 %v1141, 4294901760
        %v1143 = vsub.f32 %v1141, %v1142
        %v1144 = vand.u32 %v1143, 4294901760
        %1145 = vmatpush.msra.mxu0 %v1144
        %v1146 = vand.u32 %v1058, 4294901760
        %v1147 = vsub.f32 %v1058, %v1146
        %v1148 = vand.u32 %v1147, 4294901760
        %v1149 = vsub.f32 %v1147, %v1148
        %v1150 = vand.u32 %v1149, 4294901760
        %1151 = vmatpush.msra.mxu0 %v1150
        %v1152 = vand.u32 %v1057, 4294901760
        %v1153 = vsub.f32 %v1057, %v1152
        %v1154 = vand.u32 %v1153, 4294901760
        %v1155 = vsub.f32 %v1153, %v1154
        %v1156 = vand.u32 %v1155, 4294901760
        %1157 = vmatpush.msra.mxu0 %v1156
        %v1158 = vand.u32 %v1056, 4294901760
        %v1159 = vsub.f32 %v1056, %v1158
        %v1160 = vand.u32 %v1159, 4294901760
        %v1161 = vsub.f32 %v1159, %v1160
        %v1162 = vand.u32 %v1161, 4294901760
        %1163 = vmatpush.msra.mxu0 %v1162
        %v1164 = vand.u32 %v1055, 4294901760
        %v1165 = vsub.f32 %v1055, %v1164
        %v1166 = vand.u32 %v1165, 4294901760
        %v1167 = vsub.f32 %v1165, %v1166
        %v1168 = vand.u32 %v1167, 4294901760
        %1169 = vmatpush.msra.mxu0 %v1168
        %v1170 = vand.u32 %v1054, 4294901760
        %v1171 = vsub.f32 %v1054, %v1170
        %v1172 = vand.u32 %v1171, 4294901760
        %v1173 = vsub.f32 %v1171, %v1172
        %v1174 = vand.u32 %v1173, 4294901760
        %1175 = vmatpush.msra.mxu0 %v1174
        %v1176 = vand.u32 %v1053, 4294901760
        %v1177 = vsub.f32 %v1053, %v1176
        %v1178 = vand.u32 %v1177, 4294901760
        %v1179 = vsub.f32 %v1177, %v1178
        %v1180 = vand.u32 %v1179, 4294901760
        %1181 = vmatpush.msra.mxu0 %v1180
        %v1182 = vand.u32 %v1052, 4294901760
        %v1183 = vsub.f32 %v1052, %v1182
        %v1184 = vand.u32 %v1183, 4294901760
        %v1185 = vsub.f32 %v1183, %v1184
        %v1186 = vand.u32 %v1185, 4294901760
        %1187 = vmatpush.msra.mxu0 %v1186
        %v1188 = vand.u32 %v1051, 4294901760
        %v1189 = vsub.f32 %v1051, %v1188
        %v1190 = vand.u32 %v1189, 4294901760
        %v1191 = vsub.f32 %v1189, %v1190
        %v1192 = vand.u32 %v1191, 4294901760
        %1193 = vmatpush.msra.mxu0 %v1192
        %v1194 = vand.u32 %v1050, 4294901760
        %v1195 = vsub.f32 %v1050, %v1194
        %v1196 = vand.u32 %v1195, 4294901760
        %v1197 = vsub.f32 %v1195, %v1196
        %v1198 = vand.u32 %v1197, 4294901760
        %1199 = vmatpush.msra.mxu0 %v1198
        %v1200 = vand.u32 %v1049, 4294901760
        %v1201 = vsub.f32 %v1049, %v1200
        %v1202 = vand.u32 %v1201, 4294901760
        %v1203 = vsub.f32 %v1201, %v1202
        %v1204 = vand.u32 %v1203, 4294901760
        %1205 = vmatpush.msra.mxu0 %v1204
        %v1206 = vand.u32 %v1048, 4294901760
        %1207 = vmatmul.f32.gmra.mxu0 %v1206
        %v1208 = vpop.f32.mrf.mxu0
        %v1209 = vadd.f32 %v1108, %v1208
        %1210 = vdwg.mxu0
        %v1211 = vand.u32 %v1064, 4294901760
        %v1212 = vsub.f32 %v1064, %v1211
        %1213 = vmatpush.msra.mxu0 %v1212
        %v1214 = vand.u32 %v1063, 4294901760
        %v1215 = vsub.f32 %v1063, %v1214
        %1216 = vmatpush.msra.mxu0 %v1215
        %v1217 = vand.u32 %v1062, 4294901760
        %v1218 = vsub.f32 %v1062, %v1217
        %1219 = vmatpush.msra.mxu0 %v1218
        %v1220 = vand.u32 %v1061, 4294901760
        %v1221 = vsub.f32 %v1061, %v1220
        %1222 = vmatpush.msra.mxu0 %v1221
        %v1223 = vand.u32 %v1060, 4294901760
        %v1224 = vsub.f32 %v1060, %v1223
        %1225 = vmatpush.msra.mxu0 %v1224
        %v1226 = vand.u32 %v1059, 4294901760
        %v1227 = vsub.f32 %v1059, %v1226
        %1228 = vmatpush.msra.mxu0 %v1227
        %v1229 = vand.u32 %v1058, 4294901760
        %v1230 = vsub.f32 %v1058, %v1229
        %1231 = vmatpush.msra.mxu0 %v1230
        %v1232 = vand.u32 %v1057, 4294901760
        %v1233 = vsub.f32 %v1057, %v1232
        %1234 = vmatpush.msra.mxu0 %v1233
        %v1235 = vand.u32 %v1056, 4294901760
        %v1236 = vsub.f32 %v1056, %v1235
        %1237 = vmatpush.msra.mxu0 %v1236
        %v1238 = vand.u32 %v1055, 4294901760
        %v1239 = vsub.f32 %v1055, %v1238
        %1240 = vmatpush.msra.mxu0 %v1239
        %v1241 = vand.u32 %v1054, 4294901760
        %v1242 = vsub.f32 %v1054, %v1241
        %1243 = vmatpush.msra.mxu0 %v1242
        %v1244 = vand.u32 %v1053, 4294901760
        %v1245 = vsub.f32 %v1053, %v1244
        %1246 = vmatpush.msra.mxu0 %v1245
        %v1247 = vand.u32 %v1052, 4294901760
        %v1248 = vsub.f32 %v1052, %v1247
        %1249 = vmatpush.msra.mxu0 %v1248
        %v1250 = vand.u32 %v1051, 4294901760
        %v1251 = vsub.f32 %v1051, %v1250
        %1252 = vmatpush.msra.mxu0 %v1251
        %v1253 = vand.u32 %v1050, 4294901760
        %v1254 = vsub.f32 %v1050, %v1253
        %1255 = vmatpush.msra.mxu0 %v1254
        %v1256 = vand.u32 %v1049, 4294901760
        %v1257 = vsub.f32 %v1049, %v1256
        %1258 = vmatpush.msra.mxu0 %v1257
        %v1259 = vand.u32 %v1048, 4294901760
        %v1260 = vsub.f32 %v1048, %v1259
        %1261 = vmatmul.f32.gmra.mxu0 %v1260
        %v1262 = vpop.f32.mrf.mxu0
        %v1263 = vadd.f32 %v1209, %v1262
        %1264 = vdwg.mxu0
        %v1265 = vand.u32 %v1064, 4294901760
        %1266 = vmatpush.msra.mxu0 %v1265
        %v1267 = vand.u32 %v1063, 4294901760
        %1268 = vmatpush.msra.mxu0 %v1267
        %v1269 = vand.u32 %v1062, 4294901760
        %1270 = vmatpush.msra.mxu0 %v1269
        %v1271 = vand.u32 %v1061, 4294901760
        %1272 = vmatpush.msra.mxu0 %v1271
        %v1273 = vand.u32 %v1060, 4294901760
        %1274 = vmatpush.msra.mxu0 %v1273
        %v1275 = vand.u32 %v1059, 4294901760
        %1276 = vmatpush.msra.mxu0 %v1275
        %v1277 = vand.u32 %v1058, 4294901760
        %1278 = vmatpush.msra.mxu0 %v1277
        %v1279 = vand.u32 %v1057, 4294901760
        %1280 = vmatpush.msra.mxu0 %v1279
        %v1281 = vand.u32 %v1056, 4294901760
        %1282 = vmatpush.msra.mxu0 %v1281
        %v1283 = vand.u32 %v1055, 4294901760
        %1284 = vmatpush.msra.mxu0 %v1283
        %v1285 = vand.u32 %v1054, 4294901760
        %1286 = vmatpush.msra.mxu0 %v1285
        %v1287 = vand.u32 %v1053, 4294901760
        %1288 = vmatpush.msra.mxu0 %v1287
        %v1289 = vand.u32 %v1052, 4294901760
        %1290 = vmatpush.msra.mxu0 %v1289
        %v1291 = vand.u32 %v1051, 4294901760
        %1292 = vmatpush.msra.mxu0 %v1291
        %v1293 = vand.u32 %v1050, 4294901760
        %1294 = vmatpush.msra.mxu0 %v1293
        %v1295 = vand.u32 %v1049, 4294901760
        %1296 = vmatpush.msra.mxu0 %v1295
        %v1297 = vand.u32 %v1048, 4294901760
        %v1298 = vsub.f32 %v1048, %v1297
        %v1299 = vand.u32 %v1298, 4294901760
        %1300 = vmatmul.f32.gmra.mxu0 %v1299
        %v1301 = vpop.f32.mrf.mxu0
        %v1302 = vadd.f32 %v1263, %v1301
        %1303 = vdwg.mxu0
        %v1304 = vand.u32 %v1064, 4294901760
        %v1305 = vsub.f32 %v1064, %v1304
        %v1306 = vand.u32 %v1305, 4294901760
        %1307 = vmatpush.msra.mxu0 %v1306
        %v1308 = vand.u32 %v1063, 4294901760
        %v1309 = vsub.f32 %v1063, %v1308
        %v1310 = vand.u32 %v1309, 4294901760
        %1311 = vmatpush.msra.mxu0 %v1310
        %v1312 = vand.u32 %v1062, 4294901760
        %v1313 = vsub.f32 %v1062, %v1312
        %v1314 = vand.u32 %v1313, 4294901760
        %1315 = vmatpush.msra.mxu0 %v1314
        %v1316 = vand.u32 %v1061, 4294901760
        %v1317 = vsub.f32 %v1061, %v1316
        %v1318 = vand.u32 %v1317, 4294901760
        %1319 = vmatpush.msra.mxu0 %v1318
        %v1320 = vand.u32 %v1060, 4294901760
        %v1321 = vsub.f32 %v1060, %v1320
        %v1322 = vand.u32 %v1321, 4294901760
        %1323 = vmatpush.msra.mxu0 %v1322
        %v1324 = vand.u32 %v1059, 4294901760
        %v1325 = vsub.f32 %v1059, %v1324
        %v1326 = vand.u32 %v1325, 4294901760
        %1327 = vmatpush.msra.mxu0 %v1326
        %v1328 = vand.u32 %v1058, 4294901760
        %v1329 = vsub.f32 %v1058, %v1328
        %v1330 = vand.u32 %v1329, 4294901760
        %1331 = vmatpush.msra.mxu0 %v1330
        %v1332 = vand.u32 %v1057, 4294901760
        %v1333 = vsub.f32 %v1057, %v1332
        %v1334 = vand.u32 %v1333, 4294901760
        %1335 = vmatpush.msra.mxu0 %v1334
        %v1336 = vand.u32 %v1056, 4294901760
        %v1337 = vsub.f32 %v1056, %v1336
        %v1338 = vand.u32 %v1337, 4294901760
        %1339 = vmatpush.msra.mxu0 %v1338
        %v1340 = vand.u32 %v1055, 4294901760
        %v1341 = vsub.f32 %v1055, %v1340
        %v1342 = vand.u32 %v1341, 4294901760
        %1343 = vmatpush.msra.mxu0 %v1342
        %v1344 = vand.u32 %v1054, 4294901760
        %v1345 = vsub.f32 %v1054, %v1344
        %v1346 = vand.u32 %v1345, 4294901760
        %1347 = vmatpush.msra.mxu0 %v1346
        %v1348 = vand.u32 %v1053, 4294901760
        %v1349 = vsub.f32 %v1053, %v1348
        %v1350 = vand.u32 %v1349, 4294901760
        %1351 = vmatpush.msra.mxu0 %v1350
        %v1352 = vand.u32 %v1052, 4294901760
        %v1353 = vsub.f32 %v1052, %v1352
        %v1354 = vand.u32 %v1353, 4294901760
        %1355 = vmatpush.msra.mxu0 %v1354
        %v1356 = vand.u32 %v1051, 4294901760
        %v1357 = vsub.f32 %v1051, %v1356
        %v1358 = vand.u32 %v1357, 4294901760
        %1359 = vmatpush.msra.mxu0 %v1358
        %v1360 = vand.u32 %v1050, 4294901760
        %v1361 = vsub.f32 %v1050, %v1360
        %v1362 = vand.u32 %v1361, 4294901760
        %1363 = vmatpush.msra.mxu0 %v1362
        %v1364 = vand.u32 %v1049, 4294901760
        %v1365 = vsub.f32 %v1049, %v1364
        %v1366 = vand.u32 %v1365, 4294901760
        %1367 = vmatpush.msra.mxu0 %v1366
        %v1368 = vand.u32 %v1048, 4294901760
        %1369 = vmatmul.f32.gmra.mxu0 %v1368
        %v1370 = vpop.f32.mrf.mxu0
        %v1371 = vadd.f32 %v1302, %v1370
        %1372 = vdwg.mxu0
        %v1373 = vand.u32 %v1064, 4294901760
        %1374 = vmatpush.msra.mxu0 %v1373
        %v1375 = vand.u32 %v1063, 4294901760
        %1376 = vmatpush.msra.mxu0 %v1375
        %v1377 = vand.u32 %v1062, 4294901760
        %1378 = vmatpush.msra.mxu0 %v1377
        %v1379 = vand.u32 %v1061, 4294901760
        %1380 = vmatpush.msra.mxu0 %v1379
        %v1381 = vand.u32 %v1060, 4294901760
        %1382 = vmatpush.msra.mxu0 %v1381
        %v1383 = vand.u32 %v1059, 4294901760
        %1384 = vmatpush.msra.mxu0 %v1383
        %v1385 = vand.u32 %v1058, 4294901760
        %1386 = vmatpush.msra.mxu0 %v1385
        %v1387 = vand.u32 %v1057, 4294901760
        %1388 = vmatpush.msra.mxu0 %v1387
        %v1389 = vand.u32 %v1056, 4294901760
        %1390 = vmatpush.msra.mxu0 %v1389
        %v1391 = vand.u32 %v1055, 4294901760
        %1392 = vmatpush.msra.mxu0 %v1391
        %v1393 = vand.u32 %v1054, 4294901760
        %1394 = vmatpush.msra.mxu0 %v1393
        %v1395 = vand.u32 %v1053, 4294901760
        %1396 = vmatpush.msra.mxu0 %v1395
        %v1397 = vand.u32 %v1052, 4294901760
        %1398 = vmatpush.msra.mxu0 %v1397
        %v1399 = vand.u32 %v1051, 4294901760
        %1400 = vmatpush.msra.mxu0 %v1399
        %v1401 = vand.u32 %v1050, 4294901760
        %1402 = vmatpush.msra.mxu0 %v1401
        %v1403 = vand.u32 %v1049, 4294901760
        %1404 = vmatpush.msra.mxu0 %v1403
        %v1405 = vand.u32 %v1048, 4294901760
        %1406 = vmatmul.f32.gmra.mxu0 %v1405
        %v1407 = vpop.f32.mrf.mxu0
        %v1408 = vadd.f32 %v1371, %v1407
        %1409 = vdwg.mxu0
        %1410 = vst [vmem:[%s319] sm:$0xff] %v1408
        %s1411 = sand.u32 %s183, 1
        %s1412 = scalar_lea.sflag [#allocation4], %s1411
        %s1413 = sand.u32 %s183, 1
        %s1414 = smul.addr %s1413, 8
        %s1415 = scalar_lea.vmem [#allocation8], %s1414
        // Predicated region
        $region61: #{_ffn_forward.1} parent=47 // pred_check
          %p1416 = pneg %p193
        $region62: #{_ffn_forward.1} parent=47 // pred_check_branch
          %1418 = sbr.rel (%p1416) target = $region64
        $region63: #{_ffn_forward.1} parent=47 // pred_region
          %1420 = vsyncadd %s1412, 0
          %s1421 = smul.addr %s23, 8
          %s1422 = scalar_lea.hbm %s7, %s1421
          %s1424 = sshll.u32 %s1415, 4
          %s1425 = int_to_ptr.vmem [resolvable:$true] %s1424
          %s1426 = sshll.u32 %s1422, 4
          %s1427 = int_to_ptr.hbm [resolvable:$true] %s1426
          %1429 = dma.vmem_to_hbm [thread:$0]  %s1425, 128, %s1427, %s1412
        $region64: #{_ffn_forward.1} parent=47 // pred_fallthru
          _
      $region48: #{_ffn_forward.1} parent=5 // pred_fallthru
        _
      %p1430 = scmp.le.s32.totalorder 2, %s18
      // Predicated region
      $region65: #{_ffn_forward.1} parent=5 // pred_check
        %p1431 = pneg %p1430
      $region66: #{_ffn_forward.1} parent=5 // pred_check_branch
        %1433 = sbr.rel (%p1431) target = $region68
      $region67: #{_ffn_forward.1} parent=5 // pred_region
        %s1434 = ssub.s32 %s18, 2
        // Predicated region
        $region69: #{_ffn_forward.1} parent=67 // pred_check
          %p1435 = pneg %p199
        $region70: #{_ffn_forward.1} parent=67 // pred_check_branch
          %1437 = sbr.rel (%p1435) target = $region72
        $region71: #{_ffn_forward.1} parent=67 // pred_region
          %s1438 = sand.u32 %s184, 1
          %s1439 = scalar_lea.sflag [#allocation4], %s1438
          %s1440 = sand.u32 %s184, 1
          %s1441 = smul.addr %s1440, 8
          %s1442 = scalar_lea.vmem [#allocation8], %s1441
          %1444 = dma.done %s1439, 128
        $region72: #{_ffn_forward.1} parent=67 // pred_fallthru
          _
      $region68: #{_ffn_forward.1} parent=5 // pred_fallthru
        _
    $region6: #{_ffn_forward.1} parent=1 // loop_footer
      %s22 = sadd.s32 1, %s18
    $region7: #{_ffn_forward.1} parent=1 // loop_footer_branch
      %17 = sbr.rel target = $region3
    $region8: #{_ffn_forward.1} parent=1 // loop_exit
      _
    %1445 = vsyncpa [#allocation3], 1
    %s1446 = scalar_lea.sflag [#allocation3], 1
    %1447 = vsyncpa %s1446, 1
    %1448 = vsyncpa [#allocation6], 1
    %1449 = vsyncpa [#allocation4], 1
    %s1450 = scalar_lea.sflag [#allocation4], 1
    %1451 = vsyncpa %s1450, 1

</llo_original>
